<compile_context>
chip_gen: v5e
topology: v5e:2x2
jax: 0.10.0
libtpu: 0.0.40
codegen_flags: <defaults>
</compile_context>

<pallas_src>
import jax
import jax.numpy as jnp
import numpy as np
from jax.experimental import pallas as pl
from jax.experimental.pallas import tpu as pltpu


# --------------------------- one-time parameter packing (hoisted) ---------------------------

def pack_params(params, wp, bp, kernel_size=3):
    """Transpose conv weights to (K, Cin, Cout), im2col-pack the first conv, reshape biases
    to (1, C), pre-transpose the projection.  Called once, outside the forward path."""
    K = kernel_size
    blocks = []
    for i, blk in enumerate(params):
        cout, cin, _ = blk["w1"].shape
        d = 2 ** i
        w1t = jnp.transpose(jnp.asarray(blk["w1"], jnp.float32), (2, 1, 0))   # (K, Cin, Cout)
        entry = {
            "cin": int(cin), "cout": int(cout), "dil": int(d),
            "has_ds": bool(cin != cout),
            "b1": jnp.asarray(blk["b1"], jnp.float32).reshape(1, cout),
            "w2": jnp.transpose(jnp.asarray(blk["w2"], jnp.float32), (2, 1, 0)),
            "b2": jnp.asarray(blk["b2"], jnp.float32).reshape(1, cout),
        }
        if i == 0:
            entry["w1"] = w1t.reshape(K * cin, cout)       # im2col layout for the input conv
        else:
            entry["w1"] = w1t                              # (K, Cin, Cout), per-tap matmuls
        if entry["has_ds"]:
            entry["wd"] = jnp.transpose(jnp.asarray(blk["wd"], jnp.float32)[:, :, 0])  # (Cin, Cout)
            entry["bd"] = jnp.asarray(blk["bd"], jnp.float32).reshape(1, cout)
        blocks.append(entry)
    return {
        "K": K,
        "blocks": blocks,
        "wp": jnp.asarray(wp, jnp.float32).T,              # (C_last, E)
        "bp": jnp.asarray(bp, jnp.float32).reshape(1, -1), # (1, E)
    }


# --------------------------- tiny wrapper-side helpers (glue) ---------------------------

def _build_input_cols(x_bct, K, d):
    """Causal im2col of the raw input for the first conv: (B, Cin, T) -> (B*T, K*Cin)."""
    B, Cin, T = x_bct.shape
    xt = jnp.transpose(x_bct, (0, 2, 1)).astype(jnp.float32)      # (B, T, Cin)
    cols = []
    for k in range(K):
        s = (K - 1 - k) * d
        if s > 0:
            cols.append(jnp.pad(xt[:, :T - s, :], ((0, 0), (s, 0), (0, 0))))
        else:
            cols.append(xt)
    return jnp.concatenate(cols, axis=-1).reshape(B * T, K * Cin)


def _build_shift_matrices(shifts, BB, T):
    """(n, BB*T, BB*T) banded 0/1 matrices: (S_s @ v)[r] = v[r - s] within the same
    length-T batch segment, 0 otherwise (implements causal zero padding)."""
    n_rows = BB * T
    r = np.arange(n_rows)
    mats = []
    for s in shifts:
        m = (r[:, None] - s == r[None, :]) & (r[:, None] // T == r[None, :] // T)
        mats.append(m.astype(np.float32))
    return jnp.asarray(np.stack(mats, axis=0))


def _build_pool_matrix(BB, T):
    """(BB, BB*T) matrix that mean-pools each length-T segment."""
    p = np.zeros((BB, BB * T), np.float32)
    for b in range(BB):
        p[b, b * T:(b + 1) * T] = 1.0 / T
    return jnp.asarray(p)


# --------------------------- fused kernel ---------------------------

def _make_fused_kernel(K, blocks_meta, shift_idx):
    """Whole TCNEncoder forward for one batch tile.  Activations stay in vregs/VMEM as a
    (BB*T, C) slab; only the (BB, E) embedding is written out."""

    def kernel(*refs):
        it = iter(refs)
        x_ref, s_ref, pool_ref = next(it), next(it), next(it)
        blk_refs = []
        for meta in blocks_meta:
            r = {"w1": next(it), "b1": next(it), "w2": next(it), "b2": next(it)}
            if meta["has_ds"]:
                r["wd"] = next(it)
                r["bd"] = next(it)
            blk_refs.append(r)
        wp_ref, bp_ref, o_ref = next(it), next(it), next(it)

        def shift(v, s):
            # causal shift by s rows within each length-T segment (zeros shifted in)
            if s == 0:
                return v
            return jnp.dot(s_ref[shift_idx[s]], v, preferred_element_type=jnp.float32)

        def causal_conv(v, w_ref, b_ref, d):
            # v: (BB*T, Cin); w_ref: (K, Cin, Cout) -> (BB*T, Cout); dilation d
            acc = None
            for k in range(K):
                tap = jnp.dot(v, w_ref[k], preferred_element_type=jnp.float32)
                tap = shift(tap, (K - 1 - k) * d)
                acc = tap if acc is None else acc + tap
            return acc + b_ref[...]

        x_cols = x_ref[0]                                   # (BB*T, K*Cin0)
        cin0 = blocks_meta[0]["cin"]
        cur = x_cols[:, (K - 1) * cin0:]                    # unshifted input (BB*T, Cin0)

        for bi, meta in enumerate(blocks_meta):
            r = blk_refs[bi]
            d, cin = meta["dil"], meta["cin"]
            if bi == 0:
                if cin == 1:
                    # Cin=1 first conv: pure VPU broadcast FMA over causal input columns.
                    w1 = r["w1"][...]                       # (K, Cout)
                    h = x_cols[:, 0:1] * w1[0:1, :]
                    for k in range(1, K):
                        h = h + x_cols[:, k:k + 1] * w1[k:k + 1, :]
                    h = h + r["b1"][...]
                else:
                    # general first conv: single im2col matmul
                    h = jnp.dot(x_cols, r["w1"][...],
                                preferred_element_type=jnp.float32) + r["b1"][...]
            else:
                h = causal_conv(cur, r["w1"], r["b1"], d)
            h = jnp.maximum(h, 0.0)                         # relu1 (dropout1: identity, eval)
            h = jnp.maximum(causal_conv(h, r["w2"], r["b2"], d), 0.0)   # relu2 (dropout2: id)
            if meta["has_ds"]:
                if cin == 1:
                    res = cur * r["wd"][...] + r["bd"][...]             # VPU broadcast 1x1 conv
                else:
                    res = jnp.dot(cur, r["wd"][...],
                                  preferred_element_type=jnp.float32) + r["bd"][...]
            else:
                res = cur
            cur = jnp.maximum(h + res, 0.0)

        feat = jnp.dot(pool_ref[...], cur, preferred_element_type=jnp.float32)   # (BB, C_last)
        o_ref[0] = jnp.dot(feat, wp_ref[...],
                           preferred_element_type=jnp.float32) + bp_ref[...]

    return kernel


# --------------------------- forward ---------------------------

def tcn_encoder_forward(x_bct, packed, *, num_batch_tiles=2):
    """x_bct: (B, C_in, T) (PyTorch Conv1d layout) -> (B, emb_dim)."""
    B, cin0, T = x_bct.shape
    K = packed["K"]
    blocks = packed["blocks"]
    E = packed["wp"].shape[1]

    # batch tiling: keep a "parallel" grid axis (2 tiles feeds both v7x TensorCores)
    nt = num_batch_tiles
    if nt is None or nt < 1 or B % nt != 0:
        nt = 1
    if nt > 1 and ((B // nt) * T) % 8 != 0:
        nt = 1
    BB = B // nt
    n_rows = BB * T

    # tiny glue: causal im2col of the raw input, reshaped into per-tile slabs
    x_cols = _build_input_cols(x_bct, K, blocks[0]["dil"]).reshape(nt, n_rows, K * cin0)

    shifts = sorted({(K - 1 - k) * b["dil"] for b in blocks for k in range(K)} - {0})
    shift_idx = {s: i for i, s in enumerate(shifts)}
    smats = _build_shift_matrices(shifts if shifts else [1], BB, T)
    pool = _build_pool_matrix(BB, T)

    def _const(ndim):
        return lambda i, n=ndim: (0,) * n

    ops = [x_cols, smats, pool]
    in_specs = [
        pl.BlockSpec((1, n_rows, K * cin0), lambda i: (i, 0, 0)),
        pl.BlockSpec(smats.shape, _const(3)),
        pl.BlockSpec(pool.shape, _const(2)),
    ]
    blocks_meta = []
    for b in blocks:
        blocks_meta.append({k: b[k] for k in ("cin", "cout", "dil", "has_ds")})
        names = ("w1", "b1", "w2", "b2") + (("wd", "bd") if b["has_ds"] else ())
        for name in names:
            arr = b[name]
            ops.append(arr)
            in_specs.append(pl.BlockSpec(arr.shape, _const(arr.ndim)))
    ops += [packed["wp"], packed["bp"]]
    in_specs += [pl.BlockSpec(packed["wp"].shape, _const(2)),
                 pl.BlockSpec(packed["bp"].shape, _const(2))]

    kernel = _make_fused_kernel(K, blocks_meta, shift_idx)

    out = pl.pallas_call(
        kernel,
        out_shape=jax.ShapeDtypeStruct((nt, BB, E), jnp.float32),
        grid=(nt,),
        in_specs=in_specs,
        out_specs=pl.BlockSpec((1, BB, E), lambda i: (i, 0, 0)),
        compiler_params=pltpu.CompilerParams(dimension_semantics=("parallel",)),
    )(*ops)
    return out.reshape(B, E)


# ------------------------- parameters (deterministic init) -------------------------

def init_params(key, input_size=1, num_channels=(16, 32), kernel_size=3, emb_dim=64):
    params = []
    in_c = input_size
    keys = jax.random.split(key, len(num_channels) * 6 + 2)
    ki = 0

    def nxt():
        nonlocal ki
        k = keys[ki]
        ki += 1
        return k

    for out_c in num_channels:
        params.append(dict(
            w1=jax.random.normal(nxt(), (out_c, in_c, kernel_size), jnp.float32) * 0.1,
            b1=jax.random.normal(nxt(), (out_c,), jnp.float32) * 0.1,
            w2=jax.random.normal(nxt(), (out_c, out_c, kernel_size), jnp.float32) * 0.1,
            b2=jax.random.normal(nxt(), (out_c,), jnp.float32) * 0.1,
            wd=jax.random.normal(nxt(), (out_c, in_c, 1), jnp.float32) * 0.1,
            bd=jax.random.normal(nxt(), (out_c,), jnp.float32) * 0.1,
        ))
        in_c = out_c
    wp = jax.random.normal(nxt(), (emb_dim, in_c), jnp.float32) * 0.1
    bp = jax.random.normal(nxt(), (emb_dim,), jnp.float32) * 0.1
    return params, wp, bp


# ------------------------- pure-JAX reference (for verification) -------------------------

def ref_forward(x_bct, params, wp, bp, kernel_size=3):
    x = jnp.transpose(x_bct, (0, 2, 1)).astype(jnp.float32)
    K = kernel_size
    for i, blk in enumerate(params):
        d = 2 ** i
        pad = (K - 1) * d
        T = x.shape[1]

        def conv(inp, w, b):
            xp = jnp.pad(inp, ((0, 0), (pad, 0), (0, 0)))
            acc = jnp.zeros((inp.shape[0], T, w.shape[0]), jnp.float32)
            for k in range(K):
                acc = acc + jnp.einsum('btc,oc->bto', xp[:, k * d:k * d + T, :], w[:, :, k])
            return acc + b

        h1 = jax.nn.relu(conv(x, blk["w1"], blk["b1"]))
        h2 = jax.nn.relu(conv(h1, blk["w2"], blk["b2"]))
        if blk["w1"].shape[0] == blk["w1"].shape[1]:
            res = x
        else:
            res = jnp.einsum('btc,oc->bto', x, blk["wd"][:, :, 0]) + blk["bd"]
        x = jax.nn.relu(h2 + res)
    feat = jnp.mean(x, axis=1)
    return feat @ wp.T + bp


if __name__ == "__main__":
    key = jax.random.PRNGKey(0)
    kp, kx = jax.random.split(key)
    params, wp, bp = init_params(kp)
    packed = pack_params(params, wp, bp, kernel_size=3)   # one-time weight packing (hoisted)

    B, Cin, T = 2, 1, 16                      # PyTorch Conv1d layout: (batch, channels, time)
    x = jax.random.normal(kx, (B, Cin, T), jnp.float32)

    out = tcn_encoder_forward(x, packed)
    out = jax.block_until_ready(out)

    ref = ref_forward(x, params, wp, bp)
    np.testing.assert_allclose(np.asarray(out), np.asarray(ref), rtol=1e-4, atol=1e-4)
    assert out.shape == (B, 64)
    print("KERNEL_OK")
</pallas_src>

<mosaic_0001>
module attributes {stable_mosaic.version = 11 : i64} {
  func.func @kernel(%arg0: i32, %arg1: memref<1x16x3xf32, #tpu.memory_space<vmem>>, %arg2: memref<3x16x16xf32, #tpu.memory_space<vmem>>, %arg3: memref<1x16xf32, #tpu.memory_space<vmem>>, %arg4: memref<3x16xf32, #tpu.memory_space<vmem>>, %arg5: memref<1x16xf32, #tpu.memory_space<vmem>>, %arg6: memref<3x16x16xf32, #tpu.memory_space<vmem>>, %arg7: memref<1x16xf32, #tpu.memory_space<vmem>>, %arg8: memref<1x16xf32, #tpu.memory_space<vmem>>, %arg9: memref<1x16xf32, #tpu.memory_space<vmem>>, %arg10: memref<3x16x32xf32, #tpu.memory_space<vmem>>, %arg11: memref<1x32xf32, #tpu.memory_space<vmem>>, %arg12: memref<3x32x32xf32, #tpu.memory_space<vmem>>, %arg13: memref<1x32xf32, #tpu.memory_space<vmem>>, %arg14: memref<16x32xf32, #tpu.memory_space<vmem>>, %arg15: memref<1x32xf32, #tpu.memory_space<vmem>>, %arg16: memref<32x64xf32, #tpu.memory_space<vmem>>, %arg17: memref<1x64xf32, #tpu.memory_space<vmem>>, %arg18: memref<1x1x64xf32, #tpu.memory_space<vmem>>) attributes {dimension_semantics = [#tpu.dimension_semantics<parallel>], iteration_bounds = array<i64: 2>, scalar_prefetch = 0 : i64, scratch_operands = 0 : i64, tpu.core_type = #tpu.core_type<tc>, window_params = [{transform_indices = @transform_0, window_bounds = array<i64: 1, 16, 3>}, {pipeline_mode = #tpu.pipeline_mode<synchronous>, transform_indices = @transform_1, window_bounds = array<i64: 3, 16, 16>}, {pipeline_mode = #tpu.pipeline_mode<synchronous>, transform_indices = @transform_2, window_bounds = array<i64: 1, 16>}, {pipeline_mode = #tpu.pipeline_mode<synchronous>, transform_indices = @transform_3, window_bounds = array<i64: 3, 16>}, {pipeline_mode = #tpu.pipeline_mode<synchronous>, transform_indices = @transform_4, window_bounds = array<i64: 1, 16>}, {pipeline_mode = #tpu.pipeline_mode<synchronous>, transform_indices = @transform_5, window_bounds = array<i64: 3, 16, 16>}, {pipeline_mode = #tpu.pipeline_mode<synchronous>, transform_indices = @transform_6, window_bounds = array<i64: 1, 16>}, {pipeline_mode = #tpu.pipeline_mode<synchronous>, transform_indices = @transform_7, window_bounds = array<i64: 1, 16>}, {pipeline_mode = #tpu.pipeline_mode<synchronous>, transform_indices = @transform_8, window_bounds = array<i64: 1, 16>}, {pipeline_mode = #tpu.pipeline_mode<synchronous>, transform_indices = @transform_9, window_bounds = array<i64: 3, 16, 32>}, {pipeline_mode = #tpu.pipeline_mode<synchronous>, transform_indices = @transform_10, window_bounds = array<i64: 1, 32>}, {pipeline_mode = #tpu.pipeline_mode<synchronous>, transform_indices = @transform_11, window_bounds = array<i64: 3, 32, 32>}, {pipeline_mode = #tpu.pipeline_mode<synchronous>, transform_indices = @transform_12, window_bounds = array<i64: 1, 32>}, {pipeline_mode = #tpu.pipeline_mode<synchronous>, transform_indices = @transform_13, window_bounds = array<i64: 16, 32>}, {pipeline_mode = #tpu.pipeline_mode<synchronous>, transform_indices = @transform_14, window_bounds = array<i64: 1, 32>}, {pipeline_mode = #tpu.pipeline_mode<synchronous>, transform_indices = @transform_15, window_bounds = array<i64: 32, 64>}, {pipeline_mode = #tpu.pipeline_mode<synchronous>, transform_indices = @transform_16, window_bounds = array<i64: 1, 64>}, {transform_indices = @transform_17, window_bounds = array<i64: 1, 1, 64>}]} {
    %c0 = arith.constant 0 : index
    %c0_0 = arith.constant 0 : index
    %c0_1 = arith.constant 0 : index
    %0 = vector.load %arg1[%c0, %c0_0, %c0_1] : memref<1x16x3xf32, #tpu.memory_space<vmem>>, vector<1x16x3xf32>
    %1 = vector.shape_cast %0 : vector<1x16x3xf32> to vector<16x3xf32>
    %2 = vector.extract_strided_slice %1 {offsets = [0, 2], sizes = [16, 1], strides = [1, 1]} : vector<16x3xf32> to vector<16x1xf32>
    %c0_2 = arith.constant 0 : index
    %c0_3 = arith.constant 0 : index
    %3 = vector.load %arg4[%c0_2, %c0_3] : memref<3x16xf32, #tpu.memory_space<vmem>>, vector<3x16xf32>
    %4 = vector.extract_strided_slice %1 {offsets = [0, 0], sizes = [16, 1], strides = [1, 1]} : vector<16x3xf32> to vector<16x1xf32>
    %5 = vector.extract_strided_slice %3 {offsets = [0, 0], sizes = [1, 16], strides = [1, 1]} : vector<3x16xf32> to vector<1x16xf32>
    %6 = vector.broadcast %4 : vector<16x1xf32> to vector<16x16xf32>
    %7 = vector.broadcast %5 : vector<1x16xf32> to vector<16x16xf32>
    %8 = arith.mulf %6, %7 : vector<16x16xf32>
    %9 = vector.extract_strided_slice %1 {offsets = [0, 1], sizes = [16, 1], strides = [1, 1]} : vector<16x3xf32> to vector<16x1xf32>
    %10 = vector.extract_strided_slice %3 {offsets = [1, 0], sizes = [1, 16], strides = [1, 1]} : vector<3x16xf32> to vector<1x16xf32>
    %11 = vector.broadcast %9 : vector<16x1xf32> to vector<16x16xf32>
    %12 = vector.broadcast %10 : vector<1x16xf32> to vector<16x16xf32>
    %13 = arith.mulf %11, %12 : vector<16x16xf32>
    %14 = arith.addf %8, %13 : vector<16x16xf32>
    %15 = vector.extract_strided_slice %1 {offsets = [0, 2], sizes = [16, 1], strides = [1, 1]} : vector<16x3xf32> to vector<16x1xf32>
    %16 = vector.extract_strided_slice %3 {offsets = [2, 0], sizes = [1, 16], strides = [1, 1]} : vector<3x16xf32> to vector<1x16xf32>
    %17 = vector.broadcast %15 : vector<16x1xf32> to vector<16x16xf32>
    %18 = vector.broadcast %16 : vector<1x16xf32> to vector<16x16xf32>
    %19 = arith.mulf %17, %18 : vector<16x16xf32>
    %20 = arith.addf %14, %19 : vector<16x16xf32>
    %c0_4 = arith.constant 0 : index
    %c0_5 = arith.constant 0 : index
    %21 = vector.load %arg5[%c0_4, %c0_5] : memref<1x16xf32, #tpu.memory_space<vmem>>, vector<1x16xf32>
    %22 = vector.broadcast %21 : vector<1x16xf32> to vector<16x16xf32>
    %23 = arith.addf %20, %22 : vector<16x16xf32>
    %cst = arith.constant 0.000000e+00 : f32
    %24 = vector.broadcast %cst : f32 to vector<16x16xf32>
    %25 = arith.maximumf %23, %24 : vector<16x16xf32>
    %c0_6 = arith.constant 0 : index
    %c0_7 = arith.constant 0 : index
    %c0_8 = arith.constant 0 : index
    %26 = vector.load %arg6[%c0_6, %c0_7, %c0_8] : memref<3x16x16xf32, #tpu.memory_space<vmem>>, vector<1x16x16xf32>
    %27 = vector.shape_cast %26 : vector<1x16x16xf32> to vector<16x16xf32>
    %cst_9 = arith.constant dense<0.000000e+00> : vector<16x16xf32>
    %28 = tpu.matmul %25, %27, %cst_9 {dimension_numbers = #tpu.dot_dimension_numbers<[1], [0], [0], [1], [0, 0, 1, 1], [], []>} : vector<16x16xf32>, vector<16x16xf32>, vector<16x16xf32> -> vector<16x16xf32>
    %c1 = arith.constant 1 : index
    %c0_10 = arith.constant 0 : index
    %c0_11 = arith.constant 0 : index
    %29 = vector.load %arg2[%c1, %c0_10, %c0_11] : memref<3x16x16xf32, #tpu.memory_space<vmem>>, vector<1x16x16xf32>
    %30 = vector.shape_cast %29 : vector<1x16x16xf32> to vector<16x16xf32>
    %cst_12 = arith.constant dense<0.000000e+00> : vector<16x16xf32>
    %31 = tpu.matmul %30, %28, %cst_12 {dimension_numbers = #tpu.dot_dimension_numbers<[1], [0], [0], [1], [0, 0, 1, 1], [], []>} : vector<16x16xf32>, vector<16x16xf32>, vector<16x16xf32> -> vector<16x16xf32>
    %c1_13 = arith.constant 1 : index
    %c0_14 = arith.constant 0 : index
    %c0_15 = arith.constant 0 : index
    %32 = vector.load %arg6[%c1_13, %c0_14, %c0_15] : memref<3x16x16xf32, #tpu.memory_space<vmem>>, vector<1x16x16xf32>
    %33 = vector.shape_cast %32 : vector<1x16x16xf32> to vector<16x16xf32>
    %cst_16 = arith.constant dense<0.000000e+00> : vector<16x16xf32>
    %34 = tpu.matmul %25, %33, %cst_16 {dimension_numbers = #tpu.dot_dimension_numbers<[1], [0], [0], [1], [0, 0, 1, 1], [], []>} : vector<16x16xf32>, vector<16x16xf32>, vector<16x16xf32> -> vector<16x16xf32>
    %c0_17 = arith.constant 0 : index
    %c0_18 = arith.constant 0 : index
    %c0_19 = arith.constant 0 : index
    %35 = vector.load %arg2[%c0_17, %c0_18, %c0_19] : memref<3x16x16xf32, #tpu.memory_space<vmem>>, vector<1x16x16xf32>
    %36 = vector.shape_cast %35 : vector<1x16x16xf32> to vector<16x16xf32>
    %cst_20 = arith.constant dense<0.000000e+00> : vector<16x16xf32>
    %37 = tpu.matmul %36, %34, %cst_20 {dimension_numbers = #tpu.dot_dimension_numbers<[1], [0], [0], [1], [0, 0, 1, 1], [], []>} : vector<16x16xf32>, vector<16x16xf32>, vector<16x16xf32> -> vector<16x16xf32>
    %38 = arith.addf %31, %37 : vector<16x16xf32>
    %c2 = arith.constant 2 : index
    %c0_21 = arith.constant 0 : index
    %c0_22 = arith.constant 0 : index
    %39 = vector.load %arg6[%c2, %c0_21, %c0_22] : memref<3x16x16xf32, #tpu.memory_space<vmem>>, vector<1x16x16xf32>
    %40 = vector.shape_cast %39 : vector<1x16x16xf32> to vector<16x16xf32>
    %cst_23 = arith.constant dense<0.000000e+00> : vector<16x16xf32>
    %41 = tpu.matmul %25, %40, %cst_23 {dimension_numbers = #tpu.dot_dimension_numbers<[1], [0], [0], [1], [0, 0, 1, 1], [], []>} : vector<16x16xf32>, vector<16x16xf32>, vector<16x16xf32> -> vector<16x16xf32>
    %42 = arith.addf %38, %41 : vector<16x16xf32>
    %c0_24 = arith.constant 0 : index
    %c0_25 = arith.constant 0 : index
    %43 = vector.load %arg7[%c0_24, %c0_25] : memref<1x16xf32, #tpu.memory_space<vmem>>, vector<1x16xf32>
    %44 = vector.broadcast %43 : vector<1x16xf32> to vector<16x16xf32>
    %45 = arith.addf %42, %44 : vector<16x16xf32>
    %cst_26 = arith.constant 0.000000e+00 : f32
    %46 = vector.broadcast %cst_26 : f32 to vector<16x16xf32>
    %47 = arith.maximumf %45, %46 : vector<16x16xf32>
    %c0_27 = arith.constant 0 : index
    %c0_28 = arith.constant 0 : index
    %48 = vector.load %arg8[%c0_27, %c0_28] : memref<1x16xf32, #tpu.memory_space<vmem>>, vector<1x16xf32>
    %49 = vector.broadcast %2 : vector<16x1xf32> to vector<16x16xf32>
    %50 = vector.broadcast %48 : vector<1x16xf32> to vector<16x16xf32>
    %51 = arith.mulf %49, %50 : vector<16x16xf32>
    %c0_29 = arith.constant 0 : index
    %c0_30 = arith.constant 0 : index
    %52 = vector.load %arg9[%c0_29, %c0_30] : memref<1x16xf32, #tpu.memory_space<vmem>>, vector<1x16xf32>
    %53 = vector.broadcast %52 : vector<1x16xf32> to vector<16x16xf32>
    %54 = arith.addf %51, %53 : vector<16x16xf32>
    %55 = arith.addf %47, %54 : vector<16x16xf32>
    %cst_31 = arith.constant 0.000000e+00 : f32
    %56 = vector.broadcast %cst_31 : f32 to vector<16x16xf32>
    %57 = arith.maximumf %55, %56 : vector<16x16xf32>
    %c0_32 = arith.constant 0 : index
    %c0_33 = arith.constant 0 : index
    %c0_34 = arith.constant 0 : index
    %58 = vector.load %arg10[%c0_32, %c0_33, %c0_34] : memref<3x16x32xf32, #tpu.memory_space<vmem>>, vector<1x16x32xf32>
    %59 = vector.shape_cast %58 : vector<1x16x32xf32> to vector<16x32xf32>
    %cst_35 = arith.constant dense<0.000000e+00> : vector<16x32xf32>
    %60 = tpu.matmul %57, %59, %cst_35 {dimension_numbers = #tpu.dot_dimension_numbers<[1], [0], [0], [1], [0, 0, 1, 1], [], []>} : vector<16x16xf32>, vector<16x32xf32>, vector<16x32xf32> -> vector<16x32xf32>
    %c2_36 = arith.constant 2 : index
    %c0_37 = arith.constant 0 : index
    %c0_38 = arith.constant 0 : index
    %61 = vector.load %arg2[%c2_36, %c0_37, %c0_38] : memref<3x16x16xf32, #tpu.memory_space<vmem>>, vector<1x16x16xf32>
    %62 = vector.shape_cast %61 : vector<1x16x16xf32> to vector<16x16xf32>
    %cst_39 = arith.constant dense<0.000000e+00> : vector<16x32xf32>
    %63 = tpu.matmul %62, %60, %cst_39 {dimension_numbers = #tpu.dot_dimension_numbers<[1], [0], [0], [1], [0, 0, 1, 1], [], []>} : vector<16x16xf32>, vector<16x32xf32>, vector<16x32xf32> -> vector<16x32xf32>
    %c1_40 = arith.constant 1 : index
    %c0_41 = arith.constant 0 : index
    %c0_42 = arith.constant 0 : index
    %64 = vector.load %arg10[%c1_40, %c0_41, %c0_42] : memref<3x16x32xf32, #tpu.memory_space<vmem>>, vector<1x16x32xf32>
    %65 = vector.shape_cast %64 : vector<1x16x32xf32> to vector<16x32xf32>
    %cst_43 = arith.constant dense<0.000000e+00> : vector<16x32xf32>
    %66 = tpu.matmul %57, %65, %cst_43 {dimension_numbers = #tpu.dot_dimension_numbers<[1], [0], [0], [1], [0, 0, 1, 1], [], []>} : vector<16x16xf32>, vector<16x32xf32>, vector<16x32xf32> -> vector<16x32xf32>
    %c1_44 = arith.constant 1 : index
    %c0_45 = arith.constant 0 : index
    %c0_46 = arith.constant 0 : index
    %67 = vector.load %arg2[%c1_44, %c0_45, %c0_46] : memref<3x16x16xf32, #tpu.memory_space<vmem>>, vector<1x16x16xf32>
    %68 = vector.shape_cast %67 : vector<1x16x16xf32> to vector<16x16xf32>
    %cst_47 = arith.constant dense<0.000000e+00> : vector<16x32xf32>
    %69 = tpu.matmul %68, %66, %cst_47 {dimension_numbers = #tpu.dot_dimension_numbers<[1], [0], [0], [1], [0, 0, 1, 1], [], []>} : vector<16x16xf32>, vector<16x32xf32>, vector<16x32xf32> -> vector<16x32xf32>
    %70 = arith.addf %63, %69 : vector<16x32xf32>
    %c2_48 = arith.constant 2 : index
    %c0_49 = arith.constant 0 : index
    %c0_50 = arith.constant 0 : index
    %71 = vector.load %arg10[%c2_48, %c0_49, %c0_50] : memref<3x16x32xf32, #tpu.memory_space<vmem>>, vector<1x16x32xf32>
    %72 = vector.shape_cast %71 : vector<1x16x32xf32> to vector<16x32xf32>
    %cst_51 = arith.constant dense<0.000000e+00> : vector<16x32xf32>
    %73 = tpu.matmul %57, %72, %cst_51 {dimension_numbers = #tpu.dot_dimension_numbers<[1], [0], [0], [1], [0, 0, 1, 1], [], []>} : vector<16x16xf32>, vector<16x32xf32>, vector<16x32xf32> -> vector<16x32xf32>
    %74 = arith.addf %70, %73 : vector<16x32xf32>
    %c0_52 = arith.constant 0 : index
    %c0_53 = arith.constant 0 : index
    %75 = vector.load %arg11[%c0_52, %c0_53] : memref<1x32xf32, #tpu.memory_space<vmem>>, vector<1x32xf32>
    %76 = vector.broadcast %75 : vector<1x32xf32> to vector<16x32xf32>
    %77 = arith.addf %74, %76 : vector<16x32xf32>
    %cst_54 = arith.constant 0.000000e+00 : f32
    %78 = vector.broadcast %cst_54 : f32 to vector<16x32xf32>
    %79 = arith.maximumf %77, %78 : vector<16x32xf32>
    %c0_55 = arith.constant 0 : index
    %c0_56 = arith.constant 0 : index
    %c0_57 = arith.constant 0 : index
    %80 = vector.load %arg12[%c0_55, %c0_56, %c0_57] : memref<3x32x32xf32, #tpu.memory_space<vmem>>, vector<1x32x32xf32>
    %81 = vector.shape_cast %80 : vector<1x32x32xf32> to vector<32x32xf32>
    %cst_58 = arith.constant dense<0.000000e+00> : vector<16x32xf32>
    %82 = tpu.matmul %79, %81, %cst_58 {dimension_numbers = #tpu.dot_dimension_numbers<[1], [0], [0], [1], [0, 0, 1, 1], [], []>} : vector<16x32xf32>, vector<32x32xf32>, vector<16x32xf32> -> vector<16x32xf32>
    %c2_59 = arith.constant 2 : index
    %c0_60 = arith.constant 0 : index
    %c0_61 = arith.constant 0 : index
    %83 = vector.load %arg2[%c2_59, %c0_60, %c0_61] : memref<3x16x16xf32, #tpu.memory_space<vmem>>, vector<1x16x16xf32>
    %84 = vector.shape_cast %83 : vector<1x16x16xf32> to vector<16x16xf32>
    %cst_62 = arith.constant dense<0.000000e+00> : vector<16x32xf32>
    %85 = tpu.matmul %84, %82, %cst_62 {dimension_numbers = #tpu.dot_dimension_numbers<[1], [0], [0], [1], [0, 0, 1, 1], [], []>} : vector<16x16xf32>, vector<16x32xf32>, vector<16x32xf32> -> vector<16x32xf32>
    %c1_63 = arith.constant 1 : index
    %c0_64 = arith.constant 0 : index
    %c0_65 = arith.constant 0 : index
    %86 = vector.load %arg12[%c1_63, %c0_64, %c0_65] : memref<3x32x32xf32, #tpu.memory_space<vmem>>, vector<1x32x32xf32>
    %87 = vector.shape_cast %86 : vector<1x32x32xf32> to vector<32x32xf32>
    %cst_66 = arith.constant dense<0.000000e+00> : vector<16x32xf32>
    %88 = tpu.matmul %79, %87, %cst_66 {dimension_numbers = #tpu.dot_dimension_numbers<[1], [0], [0], [1], [0, 0, 1, 1], [], []>} : vector<16x32xf32>, vector<32x32xf32>, vector<16x32xf32> -> vector<16x32xf32>
    %c1_67 = arith.constant 1 : index
    %c0_68 = arith.constant 0 : index
    %c0_69 = arith.constant 0 : index
    %89 = vector.load %arg2[%c1_67, %c0_68, %c0_69] : memref<3x16x16xf32, #tpu.memory_space<vmem>>, vector<1x16x16xf32>
    %90 = vector.shape_cast %89 : vector<1x16x16xf32> to vector<16x16xf32>
    %cst_70 = arith.constant dense<0.000000e+00> : vector<16x32xf32>
    %91 = tpu.matmul %90, %88, %cst_70 {dimension_numbers = #tpu.dot_dimension_numbers<[1], [0], [0], [1], [0, 0, 1, 1], [], []>} : vector<16x16xf32>, vector<16x32xf32>, vector<16x32xf32> -> vector<16x32xf32>
    %92 = arith.addf %85, %91 : vector<16x32xf32>
    %c2_71 = arith.constant 2 : index
    %c0_72 = arith.constant 0 : index
    %c0_73 = arith.constant 0 : index
    %93 = vector.load %arg12[%c2_71, %c0_72, %c0_73] : memref<3x32x32xf32, #tpu.memory_space<vmem>>, vector<1x32x32xf32>
    %94 = vector.shape_cast %93 : vector<1x32x32xf32> to vector<32x32xf32>
    %cst_74 = arith.constant dense<0.000000e+00> : vector<16x32xf32>
    %95 = tpu.matmul %79, %94, %cst_74 {dimension_numbers = #tpu.dot_dimension_numbers<[1], [0], [0], [1], [0, 0, 1, 1], [], []>} : vector<16x32xf32>, vector<32x32xf32>, vector<16x32xf32> -> vector<16x32xf32>
    %96 = arith.addf %92, %95 : vector<16x32xf32>
    %c0_75 = arith.constant 0 : index
    %c0_76 = arith.constant 0 : index
    %97 = vector.load %arg13[%c0_75, %c0_76] : memref<1x32xf32, #tpu.memory_space<vmem>>, vector<1x32xf32>
    %98 = vector.broadcast %97 : vector<1x32xf32> to vector<16x32xf32>
    %99 = arith.addf %96, %98 : vector<16x32xf32>
    %cst_77 = arith.constant 0.000000e+00 : f32
    %100 = vector.broadcast %cst_77 : f32 to vector<16x32xf32>
    %101 = arith.maximumf %99, %100 : vector<16x32xf32>
    %c0_78 = arith.constant 0 : index
    %c0_79 = arith.constant 0 : index
    %102 = vector.load %arg14[%c0_78, %c0_79] : memref<16x32xf32, #tpu.memory_space<vmem>>, vector<16x32xf32>
    %cst_80 = arith.constant dense<0.000000e+00> : vector<16x32xf32>
    %103 = tpu.matmul %57, %102, %cst_80 {dimension_numbers = #tpu.dot_dimension_numbers<[1], [0], [0], [1], [0, 0, 1, 1], [], []>} : vector<16x16xf32>, vector<16x32xf32>, vector<16x32xf32> -> vector<16x32xf32>
    %c0_81 = arith.constant 0 : index
    %c0_82 = arith.constant 0 : index
    %104 = vector.load %arg15[%c0_81, %c0_82] : memref<1x32xf32, #tpu.memory_space<vmem>>, vector<1x32xf32>
    %105 = vector.broadcast %104 : vector<1x32xf32> to vector<16x32xf32>
    %106 = arith.addf %103, %105 : vector<16x32xf32>
    %107 = arith.addf %101, %106 : vector<16x32xf32>
    %cst_83 = arith.constant 0.000000e+00 : f32
    %108 = vector.broadcast %cst_83 : f32 to vector<16x32xf32>
    %109 = arith.maximumf %107, %108 : vector<16x32xf32>
    %c0_84 = arith.constant 0 : index
    %c0_85 = arith.constant 0 : index
    %110 = vector.load %arg3[%c0_84, %c0_85] : memref<1x16xf32, #tpu.memory_space<vmem>>, vector<1x16xf32>
    %cst_86 = arith.constant dense<0.000000e+00> : vector<1x32xf32>
    %111 = tpu.matmul %110, %109, %cst_86 {dimension_numbers = #tpu.dot_dimension_numbers<[1], [0], [0], [1], [0, 0, 1, 1], [], []>} : vector<1x16xf32>, vector<16x32xf32>, vector<1x32xf32> -> vector<1x32xf32>
    %c0_87 = arith.constant 0 : index
    %c0_88 = arith.constant 0 : index
    %112 = vector.load %arg16[%c0_87, %c0_88] : memref<32x64xf32, #tpu.memory_space<vmem>>, vector<32x64xf32>
    %cst_89 = arith.constant dense<0.000000e+00> : vector<1x64xf32>
    %113 = tpu.matmul %111, %112, %cst_89 {dimension_numbers = #tpu.dot_dimension_numbers<[1], [0], [0], [1], [0, 0, 1, 1], [], []>} : vector<1x32xf32>, vector<32x64xf32>, vector<1x64xf32> -> vector<1x64xf32>
    %c0_90 = arith.constant 0 : index
    %c0_91 = arith.constant 0 : index
    %114 = vector.load %arg17[%c0_90, %c0_91] : memref<1x64xf32, #tpu.memory_space<vmem>>, vector<1x64xf32>
    %115 = arith.addf %113, %114 : vector<1x64xf32>
    %c0_92 = arith.constant 0 : index
    %c0_93 = arith.constant 0 : index
    %c0_94 = arith.constant 0 : index
    %116 = vector.load %arg18[%c0_92, %c0_93, %c0_94] : memref<1x1x64xf32, #tpu.memory_space<vmem>>, vector<1x1x64xf32>
    %117 = vector.shape_cast %116 : vector<1x1x64xf32> to vector<1x64xf32>
    %118 = vector.shape_cast %115 : vector<1x64xf32> to vector<1x1x64xf32>
    tpu.vector_store %arg18[%c0_92, %c0_93, %c0_94], %118 {strides = array<i32>} : memref<1x1x64xf32, #tpu.memory_space<vmem>>, vector<1x1x64xf32>,
    return
  }
  func.func @transform_0(%arg0: i32) -> (i32, i32, i32) {
    %c0_i32 = arith.constant 0 : i32
    %c0_i32_0 = arith.constant 0 : i32
    %c0_i32_1 = arith.constant 0 : i32
    return %arg0, %c0_i32, %c0_i32_0 : i32, i32, i32
  }
  func.func @transform_1(%arg0: i32) -> (i32, i32, i32) {
    %c0_i32 = arith.constant 0 : i32
    %c0_i32_0 = arith.constant 0 : i32
    %c0_i32_1 = arith.constant 0 : i32
    %c0_i32_2 = arith.constant 0 : i32
    return %c0_i32, %c0_i32_0, %c0_i32_1 : i32, i32, i32
  }
  func.func @transform_2(%arg0: i32) -> (i32, i32) {
    %c0_i32 = arith.constant 0 : i32
    %c0_i32_0 = arith.constant 0 : i32
    %c0_i32_1 = arith.constant 0 : i32
    return %c0_i32, %c0_i32_0 : i32, i32
  }
  func.func @transform_3(%arg0: i32) -> (i32, i32) {
    %c0_i32 = arith.constant 0 : i32
    %c0_i32_0 = arith.constant 0 : i32
    %c0_i32_1 = arith.constant 0 : i32
    return %c0_i32, %c0_i32_0 : i32, i32
  }
  func.func @transform_4(%arg0: i32) -> (i32, i32) {
    %c0_i32 = arith.constant 0 : i32
    %c0_i32_0 = arith.constant 0 : i32
    %c0_i32_1 = arith.constant 0 : i32
    return %c0_i32, %c0_i32_0 : i32, i32
  }
  func.func @transform_5(%arg0: i32) -> (i32, i32, i32) {
    %c0_i32 = arith.constant 0 : i32
    %c0_i32_0 = arith.constant 0 : i32
    %c0_i32_1 = arith.constant 0 : i32
    %c0_i32_2 = arith.constant 0 : i32
    return %c0_i32, %c0_i32_0, %c0_i32_1 : i32, i32, i32
  }
  func.func @transform_6(%arg0: i32) -> (i32, i32) {
    %c0_i32 = arith.constant 0 : i32
    %c0_i32_0 = arith.constant 0 : i32
    %c0_i32_1 = arith.constant 0 : i32
    return %c0_i32, %c0_i32_0 : i32, i32
  }
  func.func @transform_7(%arg0: i32) -> (i32, i32) {
    %c0_i32 = arith.constant 0 : i32
    %c0_i32_0 = arith.constant 0 : i32
    %c0_i32_1 = arith.constant 0 : i32
    return %c0_i32, %c0_i32_0 : i32, i32
  }
  func.func @transform_8(%arg0: i32) -> (i32, i32) {
    %c0_i32 = arith.constant 0 : i32
    %c0_i32_0 = arith.constant 0 : i32
    %c0_i32_1 = arith.constant 0 : i32
    return %c0_i32, %c0_i32_0 : i32, i32
  }
  func.func @transform_9(%arg0: i32) -> (i32, i32, i32) {
    %c0_i32 = arith.constant 0 : i32
    %c0_i32_0 = arith.constant 0 : i32
    %c0_i32_1 = arith.constant 0 : i32
    %c0_i32_2 = arith.constant 0 : i32
    return %c0_i32, %c0_i32_0, %c0_i32_1 : i32, i32, i32
  }
  func.func @transform_10(%arg0: i32) -> (i32, i32) {
    %c0_i32 = arith.constant 0 : i32
    %c0_i32_0 = arith.constant 0 : i32
    %c0_i32_1 = arith.constant 0 : i32
    return %c0_i32, %c0_i32_0 : i32, i32
  }
  func.func @transform_11(%arg0: i32) -> (i32, i32, i32) {
    %c0_i32 = arith.constant 0 : i32
    %c0_i32_0 = arith.constant 0 : i32
    %c0_i32_1 = arith.constant 0 : i32
    %c0_i32_2 = arith.constant 0 : i32
    return %c0_i32, %c0_i32_0, %c0_i32_1 : i32, i32, i32
  }
  func.func @transform_12(%arg0: i32) -> (i32, i32) {
    %c0_i32 = arith.constant 0 : i32
    %c0_i32_0 = arith.constant 0 : i32
    %c0_i32_1 = arith.constant 0 : i32
    return %c0_i32, %c0_i32_0 : i32, i32
  }
  func.func @transform_13(%arg0: i32) -> (i32, i32) {
    %c0_i32 = arith.constant 0 : i32
    %c0_i32_0 = arith.constant 0 : i32
    %c0_i32_1 = arith.constant 0 : i32
    return %c0_i32, %c0_i32_0 : i32, i32
  }
  func.func @transform_14(%arg0: i32) -> (i32, i32) {
    %c0_i32 = arith.constant 0 : i32
    %c0_i32_0 = arith.constant 0 : i32
    %c0_i32_1 = arith.constant 0 : i32
    return %c0_i32, %c0_i32_0 : i32, i32
  }
  func.func @transform_15(%arg0: i32) -> (i32, i32) {
    %c0_i32 = arith.constant 0 : i32
    %c0_i32_0 = arith.constant 0 : i32
    %c0_i32_1 = arith.constant 0 : i32
    return %c0_i32, %c0_i32_0 : i32, i32
  }
  func.func @transform_16(%arg0: i32) -> (i32, i32) {
    %c0_i32 = arith.constant 0 : i32
    %c0_i32_0 = arith.constant 0 : i32
    %c0_i32_1 = arith.constant 0 : i32
    return %c0_i32, %c0_i32_0 : i32, i32
  }
  func.func @transform_17(%arg0: i32) -> (i32, i32, i32) {
    %c0_i32 = arith.constant 0 : i32
    %c0_i32_0 = arith.constant 0 : i32
    %c0_i32_1 = arith.constant 0 : i32
    return %arg0, %c0_i32, %c0_i32_0 : i32, i32, i32
  }
}

</mosaic_0001>

<llo_original>
// kernel: tpu_custom_call.1
$region0: #{tpu_custom_call.1}
  #allocation0 [shape = 'u32[]', space=smem, size = 0x4, offset = 0x4, fixed_abs, tag = 'smem constant byte address 0x4 - core index']
  #allocation1 [shape = 'u32[72,128]{1,0:T(1,128)}', space=vmem, size = 0x9000, scoped, tag = 'internal scratch']
  %s0 = inlined_call_operand.vmem [shape: f32[2,16,3], index: 0, kind: input, shape index: {}]
  %s1 = inlined_call_operand.hbm [shape: f32[3,16,16], index: 1, kind: input, shape index: {}]
  %s2 = inlined_call_operand.hbm [shape: f32[1,16], index: 2, kind: input, shape index: {}]
  %s3 = inlined_call_operand.vmem [shape: f32[3,16], index: 3, kind: input, shape index: {}]
  %s4 = inlined_call_operand.hbm [shape: f32[1,16], index: 4, kind: input, shape index: {}]
  %s5 = inlined_call_operand.hbm [shape: f32[3,16,16], index: 5, kind: input, shape index: {}]
  %s6 = inlined_call_operand.hbm [shape: f32[1,16], index: 6, kind: input, shape index: {}]
  %s7 = inlined_call_operand.hbm [shape: f32[1,16], index: 7, kind: input, shape index: {}]
  %s8 = inlined_call_operand.hbm [shape: f32[1,16], index: 8, kind: input, shape index: {}]
  %s9 = inlined_call_operand.hbm [shape: f32[3,16,32], index: 9, kind: input, shape index: {}]
  %s10 = inlined_call_operand.hbm [shape: f32[1,32], index: 10, kind: input, shape index: {}]
  %s11 = inlined_call_operand.hbm [shape: f32[3,32,32], index: 11, kind: input, shape index: {}]
  %s12 = inlined_call_operand.hbm [shape: f32[1,32], index: 12, kind: input, shape index: {}]
  %s13 = inlined_call_operand.vmem [shape: f32[16,32], index: 13, kind: input, shape index: {}]
  %s14 = inlined_call_operand.hbm [shape: f32[1,32], index: 14, kind: input, shape index: {}]
  %s15 = inlined_call_operand.vmem [shape: f32[32,64], index: 15, kind: input, shape index: {}]
  %s16 = inlined_call_operand.vmem [shape: f32[1,64], index: 16, kind: input, shape index: {}]
  %s17 = inlined_call_operand.hbm [shape: f32[2,1,64], index: 17, kind: output, shape index: {}]
  %s18 = sld [smem:[#allocation0]]
  $region149: #{tpu_custom_call.1} parent=0
    _
  %s20 = ssub.s32 1, %s18
  %s21 = scalar_select 0, %s20, %s18
  $region1: #{tpu_custom_call.1} parent=0
    #allocation2 [shape = 'u8[24576]{0}', space=vmem, size = 0x6000, scoped, tag = 'input window, operand 1, single buffered']
    #allocation3 [shape = 's32[2]{0}', space=sflag, size = 0x8, scoped, tag = 'scoped memory for tpu_custom_call.1']
    #allocation4 [shape = 's32[2]{0}', space=sflag, size = 0x8, scoped, tag = 'scoped memory for tpu_custom_call.1']
    #allocation5 [shape = 'u8[512]{0}', space=vmem, size = 0x400, scoped, tag = 'input window, operand 2, single buffered']
    #allocation6 [shape = 's32[1]{0}', space=sflag, size = 0x4, scoped, tag = 'scoped memory for tpu_custom_call.1']
    #allocation7 [shape = 'u8[512]{0}', space=vmem, size = 0x400, scoped, tag = 'input window, operand 4, single buffered']
    #allocation8 [shape = 'u8[24576]{0}', space=vmem, size = 0x6000, scoped, tag = 'input window, operand 5, single buffered']
    #allocation9 [shape = 's32[1]{0}', space=sflag, size = 0x4, scoped, tag = 'scoped memory for tpu_custom_call.1']
    #allocation10 [shape = 'u8[512]{0}', space=vmem, size = 0x400, scoped, tag = 'input window, operand 6, single buffered']
    #allocation11 [shape = 'u8[512]{0}', space=vmem, size = 0x400, scoped, tag = 'input window, operand 7, single buffered']
    #allocation12 [shape = 's32[1]{0}', space=sflag, size = 0x4, scoped, tag = 'scoped memory for tpu_custom_call.1']
    #allocation13 [shape = 'u8[512]{0}', space=vmem, size = 0x400, scoped, tag = 'input window, operand 8, single buffered']
    #allocation14 [shape = 'u8[24576]{0}', space=vmem, size = 0x6000, scoped, tag = 'input window, operand 9, single buffered']
    #allocation15 [shape = 's32[1]{0}', space=sflag, size = 0x4, scoped, tag = 'scoped memory for tpu_custom_call.1']
    #allocation16 [shape = 'u8[512]{0}', space=vmem, size = 0x400, scoped, tag = 'input window, operand 10, single buffered']
    #allocation17 [shape = 'u8[49152]{0}', space=vmem, size = 0xc000, scoped, tag = 'input window, operand 11, single buffered']
    #allocation18 [shape = 's32[1]{0}', space=sflag, size = 0x4, scoped, tag = 'scoped memory for tpu_custom_call.1']
    #allocation19 [shape = 'u8[512]{0}', space=vmem, size = 0x400, scoped, tag = 'input window, operand 12, single buffered']
    #allocation20 [shape = 'u8[512]{0}', space=vmem, size = 0x400, scoped, tag = 'input window, operand 14, single buffered']
    #allocation21 [shape = 's32[1]{0}', space=sflag, size = 0x4, scoped, tag = 'scoped memory for tpu_custom_call.1']
    #allocation22 [shape = 'u8[1024]{0}', space=vmem, size = 0x400, scoped, tag = 'output window, operand 0']
    %22 = vsyncpa [#allocation3], 0
    %23 = vsyncpa [#allocation6], 0
    %24 = vsyncpa [#allocation9], 0
    %25 = vsyncpa [#allocation12], 0
    %26 = vsyncpa [#allocation15], 0
    %27 = vsyncpa [#allocation18], 0
    %28 = vsyncpa [#allocation21], 0
    %29 = vsyncpa [#allocation4], 0
    %s30 = scalar_lea.sflag [#allocation4], 1
    %31 = vsyncpa %s30, 0
    loop: start=0, step=1, limit=4
    $region2: #{tpu_custom_call.1} parent=1 // loop_pre_header
      _
    $region3: #{tpu_custom_call.1} parent=1 // loop_header
      %s33 = sphi 0, %s37
      %p34 = scmp.ge.s32.totalorder %s33, 4
      %s43 = sphi 0, %s45
      %s46 = sphi 0, %s43
      %s47 = sphi 0, %s46
      %s63 = sphi 0, %s47
      %s67 = sphi 0, %s67
      %s69 = sphi 0, %s67
      %s70 = sphi 0, %s69
      %s84 = sphi 0, %s70
      %s88 = sphi 0, %s88
      %s90 = sphi 0, %s88
      %s91 = sphi 0, %s90
      %s105 = sphi 0, %s91
      %s109 = sphi 0, %s109
      %s111 = sphi 0, %s109
      %s112 = sphi 0, %s111
      %s126 = sphi 0, %s112
      %s130 = sphi 0, %s130
      %s132 = sphi 0, %s130
      %s133 = sphi 0, %s132
      %s147 = sphi 0, %s133
      %s151 = sphi 0, %s151
      %s153 = sphi 0, %s151
      %s154 = sphi 0, %s153
      %s168 = sphi 0, %s154
      %s172 = sphi 0, %s172
      %s174 = sphi 0, %s172
      %s175 = sphi 0, %s174
      %s189 = sphi 0, %s175
      %s193 = sphi 0, %s193
      %s195 = sphi 0, %s193
      %s196 = sphi 0, %s195
      %s210 = sphi 0, %s196
      %s214 = sphi 0, %s214
      %s216 = sphi 0, %s214
      %s217 = sphi 0, %s216
      %s231 = sphi 0, %s217
      %s235 = sphi 0, %s235
      %s237 = sphi 0, %s235
      %s238 = sphi 0, %s237
      %s252 = sphi 0, %s238
      %s256 = sphi 0, %s256
      %s258 = sphi 0, %s256
      %s259 = sphi 0, %s258
      %s273 = sphi 0, %s259
      %s277 = sphi 0, %s277
      %s279 = sphi 0, %s277
      %s280 = sphi 0, %s279
      %s294 = sphi 0, %s280
      %s298 = sphi 0, %s298
      %s300 = sphi 0, %s298
      %s301 = sphi 0, %s300
      %s315 = sphi 0, %s301
      %s319 = sphi 0, %s319
      %s321 = sphi 0, %s319
      %s322 = sphi 0, %s321
      %s336 = sphi 0, %s322
      %s340 = sphi 0, %s340
      %s342 = sphi 0, %s340
      %s343 = sphi 0, %s342
      %s357 = sphi 0, %s343
      %s361 = sphi 0, %s361
      %s363 = sphi 0, %s361
      %s364 = sphi 0, %s363
      %s378 = sphi 0, %s364
      %s382 = sphi 0, %s382
      %s384 = sphi 0, %s382
      %s385 = sphi 0, %s384
      %s399 = sphi 0, %s385
      %s405 = sphi 0, %s407
      %s408 = sphi 0, %s405
      %s409 = sphi 0, %s408
      %s425 = sphi 0, %s409
    $region4: #{tpu_custom_call.1} parent=1 // loop_header_branch
      %36 = sbr.rel (%p34) target = $region8
    $region5: #{tpu_custom_call.1} parent=1 // loop_body
      %s38 = ssub.s32 %s33, 1
      %s39 = ssub.s32 %s33, 2
      %s40 = sadd.s32 %s33, 1
      %s41 = ssub.s32 %s33, %s40
      %p42 = scmp.eq.s32.totalorder %s41, 0
      %s44 = sadd.s32 %s43, 1
      %s45 = scalar_select %p42, %s43, %s44
      %p48 = pneg %p42
      %p49 = scmp.eq.s32.totalorder %s33, 1
      %p50 = por %p48, %p49
      %p51 = scmp.ne.s32.totalorder %s43, %s46
      %p52 = scmp.eq.s32.totalorder %s33, 0
      %p53 = por %p51, %p52
      %p54 = scmp.ne.s32.totalorder %s43, %s46
      %p55 = scmp.eq.s32.totalorder %s38, 1
      %p56 = por %p54, %p55
      %p57 = scmp.ne.s32.totalorder %s46, %s47
      %p58 = scmp.eq.s32.totalorder %s38, 0
      %p59 = por %p57, %p58
      %p60 = scmp.ne.s32.totalorder %s46, %s47
      %p61 = scmp.eq.s32.totalorder %s39, 1
      %p62 = por %p60, %p61
      %p64 = scmp.ne.s32.totalorder %s47, %s63
      %p65 = scmp.eq.s32.totalorder %s39, 0
      %p66 = por %p64, %p65
      %s68 = sadd.s32 %s67, 1
      %p71 = scmp.eq.s32.totalorder %s33, 1
      %p72 = scmp.ne.s32.totalorder %s67, %s69
      %p73 = scmp.eq.s32.totalorder %s33, 0
      %p74 = por %p72, %p73
      %p75 = scmp.ne.s32.totalorder %s67, %s69
      %p76 = scmp.eq.s32.totalorder %s38, 1
      %p77 = por %p75, %p76
      %p78 = scmp.ne.s32.totalorder %s69, %s70
      %p79 = scmp.eq.s32.totalorder %s38, 0
      %p80 = por %p78, %p79
      %p81 = scmp.ne.s32.totalorder %s69, %s70
      %p82 = scmp.eq.s32.totalorder %s39, 1
      %p83 = por %p81, %p82
      %p85 = scmp.ne.s32.totalorder %s70, %s84
      %p86 = scmp.eq.s32.totalorder %s39, 0
      %p87 = por %p85, %p86
      %s89 = sadd.s32 %s88, 1
      %p92 = scmp.eq.s32.totalorder %s33, 1
      %p93 = scmp.ne.s32.totalorder %s88, %s90
      %p94 = scmp.eq.s32.totalorder %s33, 0
      %p95 = por %p93, %p94
      %p96 = scmp.ne.s32.totalorder %s88, %s90
      %p97 = scmp.eq.s32.totalorder %s38, 1
      %p98 = por %p96, %p97
      %p99 = scmp.ne.s32.totalorder %s90, %s91
      %p100 = scmp.eq.s32.totalorder %s38, 0
      %p101 = por %p99, %p100
      %p102 = scmp.ne.s32.totalorder %s90, %s91
      %p103 = scmp.eq.s32.totalorder %s39, 1
      %p104 = por %p102, %p103
      %p106 = scmp.ne.s32.totalorder %s91, %s105
      %p107 = scmp.eq.s32.totalorder %s39, 0
      %p108 = por %p106, %p107
      %s110 = sadd.s32 %s109, 1
      %p113 = scmp.eq.s32.totalorder %s33, 1
      %p114 = scmp.ne.s32.totalorder %s109, %s111
      %p115 = scmp.eq.s32.totalorder %s33, 0
      %p116 = por %p114, %p115
      %p117 = scmp.ne.s32.totalorder %s109, %s111
      %p118 = scmp.eq.s32.totalorder %s38, 1
      %p119 = por %p117, %p118
      %p120 = scmp.ne.s32.totalorder %s111, %s112
      %p121 = scmp.eq.s32.totalorder %s38, 0
      %p122 = por %p120, %p121
      %p123 = scmp.ne.s32.totalorder %s111, %s112
      %p124 = scmp.eq.s32.totalorder %s39, 1
      %p125 = por %p123, %p124
      %p127 = scmp.ne.s32.totalorder %s112, %s126
      %p128 = scmp.eq.s32.totalorder %s39, 0
      %p129 = por %p127, %p128
      %s131 = sadd.s32 %s130, 1
      %p134 = scmp.eq.s32.totalorder %s33, 1
      %p135 = scmp.ne.s32.totalorder %s130, %s132
      %p136 = scmp.eq.s32.totalorder %s33, 0
      %p137 = por %p135, %p136
      %p138 = scmp.ne.s32.totalorder %s130, %s132
      %p139 = scmp.eq.s32.totalorder %s38, 1
      %p140 = por %p138, %p139
      %p141 = scmp.ne.s32.totalorder %s132, %s133
      %p142 = scmp.eq.s32.totalorder %s38, 0
      %p143 = por %p141, %p142
      %p144 = scmp.ne.s32.totalorder %s132, %s133
      %p145 = scmp.eq.s32.totalorder %s39, 1
      %p146 = por %p144, %p145
      %p148 = scmp.ne.s32.totalorder %s133, %s147
      %p149 = scmp.eq.s32.totalorder %s39, 0
      %p150 = por %p148, %p149
      %s152 = sadd.s32 %s151, 1
      %p155 = scmp.eq.s32.totalorder %s33, 1
      %p156 = scmp.ne.s32.totalorder %s151, %s153
      %p157 = scmp.eq.s32.totalorder %s33, 0
      %p158 = por %p156, %p157
      %p159 = scmp.ne.s32.totalorder %s151, %s153
      %p160 = scmp.eq.s32.totalorder %s38, 1
      %p161 = por %p159, %p160
      %p162 = scmp.ne.s32.totalorder %s153, %s154
      %p163 = scmp.eq.s32.totalorder %s38, 0
      %p164 = por %p162, %p163
      %p165 = scmp.ne.s32.totalorder %s153, %s154
      %p166 = scmp.eq.s32.totalorder %s39, 1
      %p167 = por %p165, %p166
      %p169 = scmp.ne.s32.totalorder %s154, %s168
      %p170 = scmp.eq.s32.totalorder %s39, 0
      %p171 = por %p169, %p170
      %s173 = sadd.s32 %s172, 1
      %p176 = scmp.eq.s32.totalorder %s33, 1
      %p177 = scmp.ne.s32.totalorder %s172, %s174
      %p178 = scmp.eq.s32.totalorder %s33, 0
      %p179 = por %p177, %p178
      %p180 = scmp.ne.s32.totalorder %s172, %s174
      %p181 = scmp.eq.s32.totalorder %s38, 1
      %p182 = por %p180, %p181
      %p183 = scmp.ne.s32.totalorder %s174, %s175
      %p184 = scmp.eq.s32.totalorder %s38, 0
      %p185 = por %p183, %p184
      %p186 = scmp.ne.s32.totalorder %s174, %s175
      %p187 = scmp.eq.s32.totalorder %s39, 1
      %p188 = por %p186, %p187
      %p190 = scmp.ne.s32.totalorder %s175, %s189
      %p191 = scmp.eq.s32.totalorder %s39, 0
      %p192 = por %p190, %p191
      %s194 = sadd.s32 %s193, 1
      %p197 = scmp.eq.s32.totalorder %s33, 1
      %p198 = scmp.ne.s32.totalorder %s193, %s195
      %p199 = scmp.eq.s32.totalorder %s33, 0
      %p200 = por %p198, %p199
      %p201 = scmp.ne.s32.totalorder %s193, %s195
      %p202 = scmp.eq.s32.totalorder %s38, 1
      %p203 = por %p201, %p202
      %p204 = scmp.ne.s32.totalorder %s195, %s196
      %p205 = scmp.eq.s32.totalorder %s38, 0
      %p206 = por %p204, %p205
      %p207 = scmp.ne.s32.totalorder %s195, %s196
      %p208 = scmp.eq.s32.totalorder %s39, 1
      %p209 = por %p207, %p208
      %p211 = scmp.ne.s32.totalorder %s196, %s210
      %p212 = scmp.eq.s32.totalorder %s39, 0
      %p213 = por %p211, %p212
      %s215 = sadd.s32 %s214, 1
      %p218 = scmp.eq.s32.totalorder %s33, 1
      %p219 = scmp.ne.s32.totalorder %s214, %s216
      %p220 = scmp.eq.s32.totalorder %s33, 0
      %p221 = por %p219, %p220
      %p222 = scmp.ne.s32.totalorder %s214, %s216
      %p223 = scmp.eq.s32.totalorder %s38, 1
      %p224 = por %p222, %p223
      %p225 = scmp.ne.s32.totalorder %s216, %s217
      %p226 = scmp.eq.s32.totalorder %s38, 0
      %p227 = por %p225, %p226
      %p228 = scmp.ne.s32.totalorder %s216, %s217
      %p229 = scmp.eq.s32.totalorder %s39, 1
      %p230 = por %p228, %p229
      %p232 = scmp.ne.s32.totalorder %s217, %s231
      %p233 = scmp.eq.s32.totalorder %s39, 0
      %p234 = por %p232, %p233
      %s236 = sadd.s32 %s235, 1
      %p239 = scmp.eq.s32.totalorder %s33, 1
      %p240 = scmp.ne.s32.totalorder %s235, %s237
      %p241 = scmp.eq.s32.totalorder %s33, 0
      %p242 = por %p240, %p241
      %p243 = scmp.ne.s32.totalorder %s235, %s237
      %p244 = scmp.eq.s32.totalorder %s38, 1
      %p245 = por %p243, %p244
      %p246 = scmp.ne.s32.totalorder %s237, %s238
      %p247 = scmp.eq.s32.totalorder %s38, 0
      %p248 = por %p246, %p247
      %p249 = scmp.ne.s32.totalorder %s237, %s238
      %p250 = scmp.eq.s32.totalorder %s39, 1
      %p251 = por %p249, %p250
      %p253 = scmp.ne.s32.totalorder %s238, %s252
      %p254 = scmp.eq.s32.totalorder %s39, 0
      %p255 = por %p253, %p254
      %s257 = sadd.s32 %s256, 1
      %p260 = scmp.eq.s32.totalorder %s33, 1
      %p261 = scmp.ne.s32.totalorder %s256, %s258
      %p262 = scmp.eq.s32.totalorder %s33, 0
      %p263 = por %p261, %p262
      %p264 = scmp.ne.s32.totalorder %s256, %s258
      %p265 = scmp.eq.s32.totalorder %s38, 1
      %p266 = por %p264, %p265
      %p267 = scmp.ne.s32.totalorder %s258, %s259
      %p268 = scmp.eq.s32.totalorder %s38, 0
      %p269 = por %p267, %p268
      %p270 = scmp.ne.s32.totalorder %s258, %s259
      %p271 = scmp.eq.s32.totalorder %s39, 1
      %p272 = por %p270, %p271
      %p274 = scmp.ne.s32.totalorder %s259, %s273
      %p275 = scmp.eq.s32.totalorder %s39, 0
      %p276 = por %p274, %p275
      %s278 = sadd.s32 %s277, 1
      %p281 = scmp.eq.s32.totalorder %s33, 1
      %p282 = scmp.ne.s32.totalorder %s277, %s279
      %p283 = scmp.eq.s32.totalorder %s33, 0
      %p284 = por %p282, %p283
      %p285 = scmp.ne.s32.totalorder %s277, %s279
      %p286 = scmp.eq.s32.totalorder %s38, 1
      %p287 = por %p285, %p286
      %p288 = scmp.ne.s32.totalorder %s279, %s280
      %p289 = scmp.eq.s32.totalorder %s38, 0
      %p290 = por %p288, %p289
      %p291 = scmp.ne.s32.totalorder %s279, %s280
      %p292 = scmp.eq.s32.totalorder %s39, 1
      %p293 = por %p291, %p292
      %p295 = scmp.ne.s32.totalorder %s280, %s294
      %p296 = scmp.eq.s32.totalorder %s39, 0
      %p297 = por %p295, %p296
      %s299 = sadd.s32 %s298, 1
      %p302 = scmp.eq.s32.totalorder %s33, 1
      %p303 = scmp.ne.s32.totalorder %s298, %s300
      %p304 = scmp.eq.s32.totalorder %s33, 0
      %p305 = por %p303, %p304
      %p306 = scmp.ne.s32.totalorder %s298, %s300
      %p307 = scmp.eq.s32.totalorder %s38, 1
      %p308 = por %p306, %p307
      %p309 = scmp.ne.s32.totalorder %s300, %s301
      %p310 = scmp.eq.s32.totalorder %s38, 0
      %p311 = por %p309, %p310
      %p312 = scmp.ne.s32.totalorder %s300, %s301
      %p313 = scmp.eq.s32.totalorder %s39, 1
      %p314 = por %p312, %p313
      %p316 = scmp.ne.s32.totalorder %s301, %s315
      %p317 = scmp.eq.s32.totalorder %s39, 0
      %p318 = por %p316, %p317
      %s320 = sadd.s32 %s319, 1
      %p323 = scmp.eq.s32.totalorder %s33, 1
      %p324 = scmp.ne.s32.totalorder %s319, %s321
      %p325 = scmp.eq.s32.totalorder %s33, 0
      %p326 = por %p324, %p325
      %p327 = scmp.ne.s32.totalorder %s319, %s321
      %p328 = scmp.eq.s32.totalorder %s38, 1
      %p329 = por %p327, %p328
      %p330 = scmp.ne.s32.totalorder %s321, %s322
      %p331 = scmp.eq.s32.totalorder %s38, 0
      %p332 = por %p330, %p331
      %p333 = scmp.ne.s32.totalorder %s321, %s322
      %p334 = scmp.eq.s32.totalorder %s39, 1
      %p335 = por %p333, %p334
      %p337 = scmp.ne.s32.totalorder %s322, %s336
      %p338 = scmp.eq.s32.totalorder %s39, 0
      %p339 = por %p337, %p338
      %s341 = sadd.s32 %s340, 1
      %p344 = scmp.eq.s32.totalorder %s33, 1
      %p345 = scmp.ne.s32.totalorder %s340, %s342
      %p346 = scmp.eq.s32.totalorder %s33, 0
      %p347 = por %p345, %p346
      %p348 = scmp.ne.s32.totalorder %s340, %s342
      %p349 = scmp.eq.s32.totalorder %s38, 1
      %p350 = por %p348, %p349
      %p351 = scmp.ne.s32.totalorder %s342, %s343
      %p352 = scmp.eq.s32.totalorder %s38, 0
      %p353 = por %p351, %p352
      %p354 = scmp.ne.s32.totalorder %s342, %s343
      %p355 = scmp.eq.s32.totalorder %s39, 1
      %p356 = por %p354, %p355
      %p358 = scmp.ne.s32.totalorder %s343, %s357
      %p359 = scmp.eq.s32.totalorder %s39, 0
      %p360 = por %p358, %p359
      %s362 = sadd.s32 %s361, 1
      %p365 = scmp.eq.s32.totalorder %s33, 1
      %p366 = scmp.ne.s32.totalorder %s361, %s363
      %p367 = scmp.eq.s32.totalorder %s33, 0
      %p368 = por %p366, %p367
      %p369 = scmp.ne.s32.totalorder %s361, %s363
      %p370 = scmp.eq.s32.totalorder %s38, 1
      %p371 = por %p369, %p370
      %p372 = scmp.ne.s32.totalorder %s363, %s364
      %p373 = scmp.eq.s32.totalorder %s38, 0
      %p374 = por %p372, %p373
      %p375 = scmp.ne.s32.totalorder %s363, %s364
      %p376 = scmp.eq.s32.totalorder %s39, 1
      %p377 = por %p375, %p376
      %p379 = scmp.ne.s32.totalorder %s364, %s378
      %p380 = scmp.eq.s32.totalorder %s39, 0
      %p381 = por %p379, %p380
      %s383 = sadd.s32 %s382, 1
      %p386 = scmp.eq.s32.totalorder %s33, 1
      %p387 = scmp.ne.s32.totalorder %s382, %s384
      %p388 = scmp.eq.s32.totalorder %s33, 0
      %p389 = por %p387, %p388
      %p390 = scmp.ne.s32.totalorder %s382, %s384
      %p391 = scmp.eq.s32.totalorder %s38, 1
      %p392 = por %p390, %p391
      %p393 = scmp.ne.s32.totalorder %s384, %s385
      %p394 = scmp.eq.s32.totalorder %s38, 0
      %p395 = por %p393, %p394
      %p396 = scmp.ne.s32.totalorder %s384, %s385
      %p397 = scmp.eq.s32.totalorder %s39, 1
      %p398 = por %p396, %p397
      %p400 = scmp.ne.s32.totalorder %s385, %s399
      %p401 = scmp.eq.s32.totalorder %s39, 0
      %p402 = por %p400, %p401
      %s403 = ssub.s32 %s33, %s40
      %p404 = scmp.eq.s32.totalorder %s403, 0
      %s406 = sadd.s32 %s405, 1
      %s407 = scalar_select %p404, %s405, %s406
      %p410 = pneg %p404
      %p411 = scmp.eq.s32.totalorder %s33, 1
      %p412 = por %p410, %p411
      %p413 = scmp.ne.s32.totalorder %s405, %s408
      %p414 = scmp.eq.s32.totalorder %s33, 0
      %p415 = por %p413, %p414
      %p416 = scmp.ne.s32.totalorder %s405, %s408
      %p417 = scmp.eq.s32.totalorder %s38, 1
      %p418 = por %p416, %p417
      %p419 = scmp.ne.s32.totalorder %s408, %s409
      %p420 = scmp.eq.s32.totalorder %s38, 0
      %p421 = por %p419, %p420
      %p422 = scmp.ne.s32.totalorder %s408, %s409
      %p423 = scmp.eq.s32.totalorder %s39, 1
      %p424 = por %p422, %p423
      %p426 = scmp.ne.s32.totalorder %s409, %s425
      %p427 = scmp.eq.s32.totalorder %s39, 0
      %p428 = por %p426, %p427
      %p429 = scmp.le.s32.totalorder 1, %s33
      %p430 = scmp.lt.s32.totalorder %s33, 3
      %p431 = pnand %p429, %p430
      %p432 = pneg %p431
      // Predicated region
      $region9: #{tpu_custom_call.1} parent=5 // pred_check
        _
      $region10: #{tpu_custom_call.1} parent=5 // pred_check_branch
        %434 = sbr.rel (%p431) target = $region12
      $region11: #{tpu_custom_call.1} parent=5 // pred_region
        %s435 = ssub.s32 %s33, 1
        // Predicated region
        $region13: #{tpu_custom_call.1} parent=11 // pred_check
          %p436 = pneg %p80
        $region14: #{tpu_custom_call.1} parent=11 // pred_check_branch
          %438 = sbr.rel (%p436) target = $region16
        $region15: #{tpu_custom_call.1} parent=11 // pred_region
          %440 = vsyncadd [#allocation3], 0
          %s441 = sshll.u32 %s1, 4
          %s442 = int_to_ptr.hbm [resolvable:$true] %s441
          %s443 = sshll.u32 [#allocation2], 4
          %s444 = int_to_ptr.vmem [resolvable:$true] %s443
          %449 = dma.hbm_to_vmem [thread:$0]  %s442, 768, %s444, [#allocation3], 128, 128, 8
        $region16: #{tpu_custom_call.1} parent=11 // pred_fallthru
          _
        // Predicated region
        $region17: #{tpu_custom_call.1} parent=11 // pred_check
          %p450 = pneg %p101
        $region18: #{tpu_custom_call.1} parent=11 // pred_check_branch
          %452 = sbr.rel (%p450) target = $region20
        $region19: #{tpu_custom_call.1} parent=11 // pred_region
          %454 = vsyncadd [#allocation6], 0
          %s456 = sshll.u32 %s2, 4
          %s457 = int_to_ptr.hbm [resolvable:$true] %s456
          %s458 = sshll.u32 [#allocation5], 4
          %s459 = int_to_ptr.vmem [resolvable:$true] %s458
          %461 = dma.hbm_to_vmem [thread:$0]  %s457, 16, %s459, [#allocation6]
        $region20: #{tpu_custom_call.1} parent=11 // pred_fallthru
          _
        // Predicated region
        $region21: #{tpu_custom_call.1} parent=11 // pred_check
          %p462 = pneg %p122
        $region22: #{tpu_custom_call.1} parent=11 // pred_check_branch
          %464 = sbr.rel (%p462) target = $region24
        $region23: #{tpu_custom_call.1} parent=11 // pred_region
          _
        $region24: #{tpu_custom_call.1} parent=11 // pred_fallthru
          _
        // Predicated region
        $region25: #{tpu_custom_call.1} parent=11 // pred_check
          %p465 = pneg %p143
        $region26: #{tpu_custom_call.1} parent=11 // pred_check_branch
          %467 = sbr.rel (%p465) target = $region28
        $region27: #{tpu_custom_call.1} parent=11 // pred_region
          %469 = vsyncadd [#allocation6], 0
          %s471 = sshll.u32 %s4, 4
          %s472 = int_to_ptr.hbm [resolvable:$true] %s471
          %s473 = sshll.u32 [#allocation7], 4
          %s474 = int_to_ptr.vmem [resolvable:$true] %s473
          %476 = dma.hbm_to_vmem [thread:$0]  %s472, 16, %s474, [#allocation6]
        $region28: #{tpu_custom_call.1} parent=11 // pred_fallthru
          _
        // Predicated region
        $region29: #{tpu_custom_call.1} parent=11 // pred_check
          %p477 = pneg %p164
        $region30: #{tpu_custom_call.1} parent=11 // pred_check_branch
          %479 = sbr.rel (%p477) target = $region32
        $region31: #{tpu_custom_call.1} parent=11 // pred_region
          %481 = vsyncadd [#allocation9], 0
          %s482 = sshll.u32 %s5, 4
          %s483 = int_to_ptr.hbm [resolvable:$true] %s482
          %s484 = sshll.u32 [#allocation8], 4
          %s485 = int_to_ptr.vmem [resolvable:$true] %s484
          %490 = dma.hbm_to_vmem [thread:$0]  %s483, 768, %s485, [#allocation9], 128, 128, 8
        $region32: #{tpu_custom_call.1} parent=11 // pred_fallthru
          _
        // Predicated region
        $region33: #{tpu_custom_call.1} parent=11 // pred_check
          %p491 = pneg %p185
        $region34: #{tpu_custom_call.1} parent=11 // pred_check_branch
          %493 = sbr.rel (%p491) target = $region36
        $region35: #{tpu_custom_call.1} parent=11 // pred_region
          %495 = vsyncadd [#allocation9], 0
          %s497 = sshll.u32 %s6, 4
          %s498 = int_to_ptr.hbm [resolvable:$true] %s497
          %s499 = sshll.u32 [#allocation10], 4
          %s500 = int_to_ptr.vmem [resolvable:$true] %s499
          %502 = dma.hbm_to_vmem [thread:$0]  %s498, 16, %s500, [#allocation9]
        $region36: #{tpu_custom_call.1} parent=11 // pred_fallthru
          _
        // Predicated region
        $region37: #{tpu_custom_call.1} parent=11 // pred_check
          %p503 = pneg %p206
        $region38: #{tpu_custom_call.1} parent=11 // pred_check_branch
          %505 = sbr.rel (%p503) target = $region40
        $region39: #{tpu_custom_call.1} parent=11 // pred_region
          %507 = vsyncadd [#allocation12], 0
          %s509 = sshll.u32 %s7, 4
          %s510 = int_to_ptr.hbm [resolvable:$true] %s509
          %s511 = sshll.u32 [#allocation11], 4
          %s512 = int_to_ptr.vmem [resolvable:$true] %s511
          %514 = dma.hbm_to_vmem [thread:$0]  %s510, 16, %s512, [#allocation12]
        $region40: #{tpu_custom_call.1} parent=11 // pred_fallthru
          _
        // Predicated region
        $region41: #{tpu_custom_call.1} parent=11 // pred_check
          %p515 = pneg %p227
        $region42: #{tpu_custom_call.1} parent=11 // pred_check_branch
          %517 = sbr.rel (%p515) target = $region44
        $region43: #{tpu_custom_call.1} parent=11 // pred_region
          %519 = vsyncadd [#allocation12], 0
          %s521 = sshll.u32 %s8, 4
          %s522 = int_to_ptr.hbm [resolvable:$true] %s521
          %s523 = sshll.u32 [#allocation13], 4
          %s524 = int_to_ptr.vmem [resolvable:$true] %s523
          %526 = dma.hbm_to_vmem [thread:$0]  %s522, 16, %s524, [#allocation12]
        $region44: #{tpu_custom_call.1} parent=11 // pred_fallthru
          _
        // Predicated region
        $region45: #{tpu_custom_call.1} parent=11 // pred_check
          %p527 = pneg %p248
        $region46: #{tpu_custom_call.1} parent=11 // pred_check_branch
          %529 = sbr.rel (%p527) target = $region48
        $region47: #{tpu_custom_call.1} parent=11 // pred_region
          %531 = vsyncadd [#allocation15], 0
          %s532 = sshll.u32 %s9, 4
          %s533 = int_to_ptr.hbm [resolvable:$true] %s532
          %s534 = sshll.u32 [#allocation14], 4
          %s535 = int_to_ptr.vmem [resolvable:$true] %s534
          %540 = dma.hbm_to_vmem [thread:$0]  %s533, 768, %s535, [#allocation15], 128, 128, 8
        $region48: #{tpu_custom_call.1} parent=11 // pred_fallthru
          _
        // Predicated region
        $region49: #{tpu_custom_call.1} parent=11 // pred_check
          %p541 = pneg %p269
        $region50: #{tpu_custom_call.1} parent=11 // pred_check_branch
          %543 = sbr.rel (%p541) target = $region52
        $region51: #{tpu_custom_call.1} parent=11 // pred_region
          %545 = vsyncadd [#allocation15], 0
          %s547 = sshll.u32 %s10, 4
          %s548 = int_to_ptr.hbm [resolvable:$true] %s547
          %s549 = sshll.u32 [#allocation16], 4
          %s550 = int_to_ptr.vmem [resolvable:$true] %s549
          %552 = dma.hbm_to_vmem [thread:$0]  %s548, 16, %s550, [#allocation15]
        $region52: #{tpu_custom_call.1} parent=11 // pred_fallthru
          _
        // Predicated region
        $region53: #{tpu_custom_call.1} parent=11 // pred_check
          %p553 = pneg %p290
        $region54: #{tpu_custom_call.1} parent=11 // pred_check_branch
          %555 = sbr.rel (%p553) target = $region56
        $region55: #{tpu_custom_call.1} parent=11 // pred_region
          %557 = vsyncadd [#allocation18], 0
          %s558 = sshll.u32 %s11, 4
          %s559 = int_to_ptr.hbm [resolvable:$true] %s558
          %s560 = sshll.u32 [#allocation17], 4
          %s561 = int_to_ptr.vmem [resolvable:$true] %s560
          %566 = dma.hbm_to_vmem [thread:$0]  %s559, 1536, %s561, [#allocation18], 128, 128, 8
        $region56: #{tpu_custom_call.1} parent=11 // pred_fallthru
          _
        // Predicated region
        $region57: #{tpu_custom_call.1} parent=11 // pred_check
          %p567 = pneg %p311
        $region58: #{tpu_custom_call.1} parent=11 // pred_check_branch
          %569 = sbr.rel (%p567) target = $region60
        $region59: #{tpu_custom_call.1} parent=11 // pred_region
          %571 = vsyncadd [#allocation18], 0
          %s573 = sshll.u32 %s12, 4
          %s574 = int_to_ptr.hbm [resolvable:$true] %s573
          %s575 = sshll.u32 [#allocation19], 4
          %s576 = int_to_ptr.vmem [resolvable:$true] %s575
          %578 = dma.hbm_to_vmem [thread:$0]  %s574, 16, %s576, [#allocation18]
        $region60: #{tpu_custom_call.1} parent=11 // pred_fallthru
          _
        // Predicated region
        $region61: #{tpu_custom_call.1} parent=11 // pred_check
          %p579 = pneg %p332
        $region62: #{tpu_custom_call.1} parent=11 // pred_check_branch
          %581 = sbr.rel (%p579) target = $region64
        $region63: #{tpu_custom_call.1} parent=11 // pred_region
          _
        $region64: #{tpu_custom_call.1} parent=11 // pred_fallthru
          _
        // Predicated region
        $region65: #{tpu_custom_call.1} parent=11 // pred_check
          %p582 = pneg %p353
        $region66: #{tpu_custom_call.1} parent=11 // pred_check_branch
          %584 = sbr.rel (%p582) target = $region68
        $region67: #{tpu_custom_call.1} parent=11 // pred_region
          %586 = vsyncadd [#allocation21], 0
          %s588 = sshll.u32 %s14, 4
          %s589 = int_to_ptr.hbm [resolvable:$true] %s588
          %s590 = sshll.u32 [#allocation20], 4
          %s591 = int_to_ptr.vmem [resolvable:$true] %s590
          %593 = dma.hbm_to_vmem [thread:$0]  %s589, 16, %s591, [#allocation21]
        $region68: #{tpu_custom_call.1} parent=11 // pred_fallthru
          _
        // Predicated region
        $region69: #{tpu_custom_call.1} parent=11 // pred_check
          %p594 = pneg %p374
        $region70: #{tpu_custom_call.1} parent=11 // pred_check_branch
          %596 = sbr.rel (%p594) target = $region72
        $region71: #{tpu_custom_call.1} parent=11 // pred_region
          _
        $region72: #{tpu_custom_call.1} parent=11 // pred_fallthru
          _
        // Predicated region
        $region73: #{tpu_custom_call.1} parent=11 // pred_check
          %p597 = pneg %p395
        $region74: #{tpu_custom_call.1} parent=11 // pred_check_branch
          %599 = sbr.rel (%p597) target = $region76
        $region75: #{tpu_custom_call.1} parent=11 // pred_region
          _
        $region76: #{tpu_custom_call.1} parent=11 // pred_fallthru
          _
      $region12: #{tpu_custom_call.1} parent=5 // pred_fallthru
        _
      %p600 = scmp.lt.s32.totalorder %s33, 2
      // Predicated region
      $region77: #{tpu_custom_call.1} parent=5 // pred_check
        %p601 = pneg %p600
      $region78: #{tpu_custom_call.1} parent=5 // pred_check_branch
        %603 = sbr.rel (%p601) target = $region80
      $region79: #{tpu_custom_call.1} parent=5 // pred_region
        // Predicated region
        $region81: #{tpu_custom_call.1} parent=79 // pred_check
          %p604 = pneg %p53
        $region82: #{tpu_custom_call.1} parent=79 // pred_check_branch
          %606 = sbr.rel (%p604) target = $region84
        $region83: #{tpu_custom_call.1} parent=79 // pred_region
          %p607 = scmp.lt.s32.totalorder %s33, 1
          %s608 = scalar_select %p607, %s33, 1
          %s609 = smul.addr %s608, 2
          %s610 = smul.addr %s609, 8
          %s611 = scalar_lea.vmem %s0, %s610
        $region84: #{tpu_custom_call.1} parent=79 // pred_fallthru
          _
      $region80: #{tpu_custom_call.1} parent=5 // pred_fallthru
        _
      %p612 = scmp.le.s32.totalorder 1, %s33
      %p613 = scmp.lt.s32.totalorder %s33, 3
      %p614 = pnand %p612, %p613
      %p615 = pneg %p614
      // Predicated region
      $region85: #{tpu_custom_call.1} parent=5 // pred_check
        _
      $region86: #{tpu_custom_call.1} parent=5 // pred_check_branch
        %617 = sbr.rel (%p614) target = $region88
      $region87: #{tpu_custom_call.1} parent=5 // pred_region
        %s618 = ssub.s32 %s33, 1
        // Predicated region
        $region89: #{tpu_custom_call.1} parent=87 // pred_check
          %p619 = pneg %p80
        $region90: #{tpu_custom_call.1} parent=87 // pred_check_branch
          %621 = sbr.rel (%p619) target = $region92
        $region91: #{tpu_custom_call.1} parent=87 // pred_region
          %623 = dma.done [#allocation3], 768
        $region92: #{tpu_custom_call.1} parent=87 // pred_fallthru
          _
        // Predicated region
        $region93: #{tpu_custom_call.1} parent=87 // pred_check
          %p624 = pneg %p101
        $region94: #{tpu_custom_call.1} parent=87 // pred_check_branch
          %626 = sbr.rel (%p624) target = $region96
        $region95: #{tpu_custom_call.1} parent=87 // pred_region
          %628 = dma.done [#allocation6], 16
        $region96: #{tpu_custom_call.1} parent=87 // pred_fallthru
          _
        // Predicated region
        $region97: #{tpu_custom_call.1} parent=87 // pred_check
          %p629 = pneg %p143
        $region98: #{tpu_custom_call.1} parent=87 // pred_check_branch
          %631 = sbr.rel (%p629) target = $region100
        $region99: #{tpu_custom_call.1} parent=87 // pred_region
          %633 = dma.done [#allocation6], 16
        $region100: #{tpu_custom_call.1} parent=87 // pred_fallthru
          _
        // Predicated region
        $region101: #{tpu_custom_call.1} parent=87 // pred_check
          %p634 = pneg %p164
        $region102: #{tpu_custom_call.1} parent=87 // pred_check_branch
          %636 = sbr.rel (%p634) target = $region104
        $region103: #{tpu_custom_call.1} parent=87 // pred_region
          %638 = dma.done [#allocation9], 768
        $region104: #{tpu_custom_call.1} parent=87 // pred_fallthru
          _
        // Predicated region
        $region105: #{tpu_custom_call.1} parent=87 // pred_check
          %p639 = pneg %p185
        $region106: #{tpu_custom_call.1} parent=87 // pred_check_branch
          %641 = sbr.rel (%p639) target = $region108
        $region107: #{tpu_custom_call.1} parent=87 // pred_region
          %643 = dma.done [#allocation9], 16
        $region108: #{tpu_custom_call.1} parent=87 // pred_fallthru
          _
        // Predicated region
        $region109: #{tpu_custom_call.1} parent=87 // pred_check
          %p644 = pneg %p206
        $region110: #{tpu_custom_call.1} parent=87 // pred_check_branch
          %646 = sbr.rel (%p644) target = $region112
        $region111: #{tpu_custom_call.1} parent=87 // pred_region
          %648 = dma.done [#allocation12], 16
        $region112: #{tpu_custom_call.1} parent=87 // pred_fallthru
          _
        // Predicated region
        $region113: #{tpu_custom_call.1} parent=87 // pred_check
          %p649 = pneg %p227
        $region114: #{tpu_custom_call.1} parent=87 // pred_check_branch
          %651 = sbr.rel (%p649) target = $region116
        $region115: #{tpu_custom_call.1} parent=87 // pred_region
          %653 = dma.done [#allocation12], 16
        $region116: #{tpu_custom_call.1} parent=87 // pred_fallthru
          _
        // Predicated region
        $region117: #{tpu_custom_call.1} parent=87 // pred_check
          %p654 = pneg %p248
        $region118: #{tpu_custom_call.1} parent=87 // pred_check_branch
          %656 = sbr.rel (%p654) target = $region120
        $region119: #{tpu_custom_call.1} parent=87 // pred_region
          %658 = dma.done [#allocation15], 768
        $region120: #{tpu_custom_call.1} parent=87 // pred_fallthru
          _
        // Predicated region
        $region121: #{tpu_custom_call.1} parent=87 // pred_check
          %p659 = pneg %p269
        $region122: #{tpu_custom_call.1} parent=87 // pred_check_branch
          %661 = sbr.rel (%p659) target = $region124
        $region123: #{tpu_custom_call.1} parent=87 // pred_region
          %663 = dma.done [#allocation15], 16
        $region124: #{tpu_custom_call.1} parent=87 // pred_fallthru
          _
        // Predicated region
        $region125: #{tpu_custom_call.1} parent=87 // pred_check
          %p664 = pneg %p290
        $region126: #{tpu_custom_call.1} parent=87 // pred_check_branch
          %666 = sbr.rel (%p664) target = $region128
        $region127: #{tpu_custom_call.1} parent=87 // pred_region
          %668 = dma.done [#allocation18], 1536
        $region128: #{tpu_custom_call.1} parent=87 // pred_fallthru
          _
        // Predicated region
        $region129: #{tpu_custom_call.1} parent=87 // pred_check
          %p669 = pneg %p311
        $region130: #{tpu_custom_call.1} parent=87 // pred_check_branch
          %671 = sbr.rel (%p669) target = $region132
        $region131: #{tpu_custom_call.1} parent=87 // pred_region
          %673 = dma.done [#allocation18], 16
        $region132: #{tpu_custom_call.1} parent=87 // pred_fallthru
          _
        // Predicated region
        $region133: #{tpu_custom_call.1} parent=87 // pred_check
          %p674 = pneg %p353
        $region134: #{tpu_custom_call.1} parent=87 // pred_check_branch
          %676 = sbr.rel (%p674) target = $region136
        $region135: #{tpu_custom_call.1} parent=87 // pred_region
          %678 = dma.done [#allocation21], 16
        $region136: #{tpu_custom_call.1} parent=87 // pred_fallthru
          _
        %p679 = scmp.lt.s32.totalorder %s38, 1
        %s680 = scalar_select %p679, %s38, 1
        %s681 = smul.addr %s680, 2
        %s682 = smul.addr %s681, 8
        %s683 = scalar_lea.vmem %s0, %s682
        %p684 = pneg %p59
        %p685 = pneg %p56
        %p686 = pneg %p80
        %p687 = pneg %p77
        %p688 = pneg %p101
        %p689 = pneg %p98
        %p690 = pneg %p122
        %p691 = pneg %p119
        %p692 = pneg %p143
        %p693 = pneg %p140
        %p694 = pneg %p164
        %p695 = pneg %p161
        %p696 = pneg %p185
        %p697 = pneg %p182
        %p698 = pneg %p206
        %p699 = pneg %p203
        %p700 = pneg %p227
        %p701 = pneg %p224
        %p702 = pneg %p248
        %p703 = pneg %p245
        %p704 = pneg %p269
        %p705 = pneg %p266
        %p706 = pneg %p290
        %p707 = pneg %p287
        %p708 = pneg %p311
        %p709 = pneg %p308
        %p710 = pneg %p332
        %p711 = pneg %p329
        %p712 = pneg %p353
        %p713 = pneg %p350
        %p714 = pneg %p374
        %p715 = pneg %p371
        %p716 = pneg %p395
        %p717 = pneg %p392
        %p718 = pneg %p421
        %p719 = pneg %p418
        %s720 = sand.u32 %s408, 1
        %s721 = scalar_lea.sflag [#allocation4], %s720
        %s722 = sand.u32 %s408, 1
        %s723 = scalar_lea.vmem [#allocation22], %s722
        %p724 = scmp.lt.s32.totalorder %s38, 1
        %s725 = scalar_select %p724, %s38, 1
        %s726 = smul.addr %s725, 2
        %s727 = smul.addr %s726, 8
        %s728 = scalar_lea.vmem %s0, %s727
        %v729 = vld [vmem:[%s728] sm:$0xff]
        %v730 = vld [vmem:[%s728 + $0x8] sm:$0xff]
        %v731 = vld [vmem:[%s3] sm:$0x7]
        %733 = vset.pattern.permute.xlu0 0
        %734 = vperm.xlu0 %733, %v729
        %v735 = vpop.permute.xlu0 %734
        %738 = vset.pattern.permute.xlu0 0
        %739 = vperm.xlu0 %738, %v730
        %v740 = vpop.permute.xlu0 %739
        %v742 = vperm.slane %v731, 0
        %v743 = vmul.f32 %v735, %v742
        %v744 = vmul.f32 %v740, %v742
        %745 = vset.pattern.permute.xlu0 1
        %746 = vperm.xlu0 %745, %v729
        %v747 = vpop.permute.xlu0 %746
        %749 = vset.pattern.permute.xlu0 1
        %750 = vperm.xlu0 %749, %v730
        %v751 = vpop.permute.xlu0 %750
        %v753 = vperm.slane %v731, 1
        %v754 = vmul.f32 %v747, %v753
        %v755 = vmul.f32 %v751, %v753
        %v756 = vadd.f32 %v743, %v754
        %v757 = vadd.f32 %v744, %v755
        %758 = vset.pattern.permute.xlu0 2
        %759 = vperm.xlu0 %758, %v729
        %v760 = vpop.permute.xlu0 %759
        %762 = vset.pattern.permute.xlu0 2
        %763 = vperm.xlu0 %762, %v730
        %v764 = vpop.permute.xlu0 %763
        %v766 = vperm.slane %v731, 2
        %v767 = vmul.f32 %v760, %v766
        %v768 = vmul.f32 %v764, %v766
        %v769 = vadd.f32 %v756, %v767
        %v770 = vadd.f32 %v757, %v768
        %v771 = vld [vmem:[#allocation7] sm:$0x1]
        %v773 = vperm.slane %v771, 0
        %v775 = vadd.f32 %v769, %v773
        %v776 = vadd.f32 %v770, %v773
        %v777 = vmax.f32 %v775, 0.0
        %v778 = vmax.f32 %v776, 0.0
        %v779 = vld [vmem:[#allocation8] sm:$0xff]
        %v780 = vld [vmem:[#allocation8 + $0x8] sm:$0xff]
        %vm781 = vcmask 130048
        %v783 = vsel %vm781, %v777, 0
        %v786 = vsel %vm781, %v778, 0
        %788 = vmatpush.msra.mxu0 0.0
        %789 = vmatpush.msra.mxu0 0.0
        %790 = vmatpush.msra.mxu0 0.0
        %791 = vmatpush.msra.mxu0 0.0
        %792 = vmatpush.msra.mxu0 0.0
        %793 = vmatpush.msra.mxu0 0.0
        %794 = vmatpush.msra.mxu0 0.0
        %795 = vmatpush.msra.mxu0 0.0
        %796 = vmatpush.msra.mxu0 0.0
        %797 = vmatpush.msra.mxu0 0.0
        %798 = vmatpush.msra.mxu0 0.0
        %799 = vmatpush.msra.mxu0 0.0
        %800 = vmatpush.msra.mxu0 0.0
        %801 = vmatpush.msra.mxu0 0.0
        %802 = vmatpush.msra.mxu0 %v780
        %803 = vmatpush.msra.mxu0 %v779
        %804 = vmatmul.f32.gmra.mxu0 %v783
        %v805 = vpop.f32.mrf.mxu0
        %v806 = vadd.f32 0.0, %v805
        %807 = vmatmul.f32.gmra.mxu0 %v786
        %v808 = vpop.f32.mrf.mxu0
        %v809 = vadd.f32 0.0, %v808
        %810 = vdwg.mxu0
        %s811 = scalar_lea.vmem [#allocation2], 16
        %v812 = vld [vmem:[%s811] sm:$0xff]
        %v813 = vld [vmem:[%s811 + $0x8] sm:$0xff]
        %s814 = scalar_lea.vmem [#allocation8], 16
        %v815 = vld [vmem:[%s814] sm:$0xff]
        %v816 = vld [vmem:[%s814 + $0x8] sm:$0xff]
        %817 = vmatpush.msra.mxu0 0.0
        %818 = vmatpush.msra.mxu0 0.0
        %819 = vmatpush.msra.mxu0 0.0
        %820 = vmatpush.msra.mxu0 0.0
        %821 = vmatpush.msra.mxu0 0.0
        %822 = vmatpush.msra.mxu0 0.0
        %823 = vmatpush.msra.mxu0 0.0
        %824 = vmatpush.msra.mxu0 0.0
        %825 = vmatpush.msra.mxu0 0.0
        %826 = vmatpush.msra.mxu0 0.0
        %827 = vmatpush.msra.mxu0 0.0
        %828 = vmatpush.msra.mxu0 0.0
        %829 = vmatpush.msra.mxu0 0.0
        %830 = vmatpush.msra.mxu0 0.0
        %831 = vmatpush.msra.mxu0 %v816
        %832 = vmatpush.msra.mxu0 %v815
        %833 = vmatmul.f32.gmra.mxu0 %v783
        %v834 = vpop.f32.mrf.mxu0
        %v835 = vadd.f32 0.0, %v834
        %836 = vmatmul.f32.gmra.mxu0 %v786
        %v837 = vpop.f32.mrf.mxu0
        %v838 = vadd.f32 0.0, %v837
        %839 = vdwg.mxu0
        %v840 = vld [vmem:[#allocation2] sm:$0xff]
        %v841 = vld [vmem:[#allocation2 + $0x8] sm:$0xff]
        %v843 = vsel %vm781, %v840, 0
        %v846 = vsel %vm781, %v841, 0
        %848 = vmatpush.msra.mxu0 0.0
        %849 = vmatpush.msra.mxu0 0.0
        %850 = vmatpush.msra.mxu0 0.0
        %851 = vmatpush.msra.mxu0 0.0
        %852 = vmatpush.msra.mxu0 0.0
        %853 = vmatpush.msra.mxu0 0.0
        %854 = vmatpush.msra.mxu0 0.0
        %855 = vmatpush.msra.mxu0 0.0
        %856 = vmatpush.msra.mxu0 0.0
        %857 = vmatpush.msra.mxu0 0.0
        %858 = vmatpush.msra.mxu0 0.0
        %859 = vmatpush.msra.mxu0 0.0
        %860 = vmatpush.msra.mxu0 0.0
        %861 = vmatpush.msra.mxu0 0.0
        %862 = vmatpush.msra.mxu0 %v838
        %863 = vmatpush.msra.mxu0 %v835
        %864 = vmatmul.f32.gmra.mxu0 %v843
        %v865 = vpop.f32.mrf.mxu0
        %v866 = vadd.f32 0.0, %v865
        %867 = vmatmul.f32.gmra.mxu0 %v846
        %v868 = vpop.f32.mrf.mxu0
        %v869 = vadd.f32 0.0, %v868
        %870 = vdwg.mxu0
        %v872 = vsel %vm781, %v812, 0
        %v875 = vsel %vm781, %v813, 0
        %877 = vmatpush.msra.mxu0 0.0
        %878 = vmatpush.msra.mxu0 0.0
        %879 = vmatpush.msra.mxu0 0.0
        %880 = vmatpush.msra.mxu0 0.0
        %881 = vmatpush.msra.mxu0 0.0
        %882 = vmatpush.msra.mxu0 0.0
        %883 = vmatpush.msra.mxu0 0.0
        %884 = vmatpush.msra.mxu0 0.0
        %885 = vmatpush.msra.mxu0 0.0
        %886 = vmatpush.msra.mxu0 0.0
        %887 = vmatpush.msra.mxu0 0.0
        %888 = vmatpush.msra.mxu0 0.0
        %889 = vmatpush.msra.mxu0 0.0
        %890 = vmatpush.msra.mxu0 0.0
        %891 = vmatpush.msra.mxu0 %v809
        %892 = vmatpush.msra.mxu0 %v806
        %893 = vmatmul.f32.gmra.mxu0 %v872
        %v894 = vpop.f32.mrf.mxu0
        %v895 = vadd.f32 %v866, %v894
        %896 = vmatmul.f32.gmra.mxu0 %v875
        %v897 = vpop.f32.mrf.mxu0
        %v898 = vadd.f32 %v869, %v897
        %899 = vdwg.mxu0
        %s900 = scalar_lea.vmem [#allocation8], 32
        %v901 = vld [vmem:[%s900] sm:$0xff]
        %v902 = vld [vmem:[%s900 + $0x8] sm:$0xff]
        %903 = vmatpush.msra.mxu0 0.0
        %904 = vmatpush.msra.mxu0 0.0
        %905 = vmatpush.msra.mxu0 0.0
        %906 = vmatpush.msra.mxu0 0.0
        %907 = vmatpush.msra.mxu0 0.0
        %908 = vmatpush.msra.mxu0 0.0
        %909 = vmatpush.msra.mxu0 0.0
        %910 = vmatpush.msra.mxu0 0.0
        %911 = vmatpush.msra.mxu0 0.0
        %912 = vmatpush.msra.mxu0 0.0
        %913 = vmatpush.msra.mxu0 0.0
        %914 = vmatpush.msra.mxu0 0.0
        %915 = vmatpush.msra.mxu0 0.0
        %916 = vmatpush.msra.mxu0 0.0
        %917 = vmatpush.msra.mxu0 %v902
        %918 = vmatpush.msra.mxu0 %v901
        %919 = vmatmul.f32.gmra.mxu0 %v783
        %v920 = vpop.f32.mrf.mxu0
        %v921 = vadd.f32 0.0, %v920
        %922 = vmatmul.f32.gmra.mxu0 %v786
        %v923 = vpop.f32.mrf.mxu0
        %v924 = vadd.f32 0.0, %v923
        %925 = vdwg.mxu0
        %v926 = vadd.f32 %v895, %v921
        %v927 = vadd.f32 %v898, %v924
        %v928 = vld [vmem:[#allocation10] sm:$0x1]
        %v930 = vperm.slane %v928, 0
        %v932 = vadd.f32 %v926, %v930
        %v933 = vadd.f32 %v927, %v930
        %v934 = vmax.f32 %v932, 0.0
        %v935 = vmax.f32 %v933, 0.0
        %v936 = vld [vmem:[#allocation11] sm:$0x1]
        %v938 = vperm.slane %v936, 0
        %v940 = vmul.f32 %v760, %v938
        %v941 = vmul.f32 %v764, %v938
        %v942 = vld [vmem:[#allocation13] sm:$0x1]
        %v944 = vperm.slane %v942, 0
        %v946 = vadd.f32 %v940, %v944
        %v947 = vadd.f32 %v941, %v944
        %v948 = vadd.f32 %v934, %v946
        %v949 = vadd.f32 %v935, %v947
        %v950 = vmax.f32 %v948, 0.0
        %v951 = vmax.f32 %v949, 0.0
        %v952 = vld [vmem:[#allocation14] sm:$0xff]
        %v953 = vld [vmem:[#allocation14 + $0x8] sm:$0xff]
        %v955 = vsel %vm781, %v950, 0
        %v958 = vsel %vm781, %v951, 0
        %960 = vmatpush.msra.mxu0 0.0
        %961 = vmatpush.msra.mxu0 0.0
        %962 = vmatpush.msra.mxu0 0.0
        %963 = vmatpush.msra.mxu0 0.0
        %964 = vmatpush.msra.mxu0 0.0
        %965 = vmatpush.msra.mxu0 0.0
        %966 = vmatpush.msra.mxu0 0.0
        %967 = vmatpush.msra.mxu0 0.0
        %968 = vmatpush.msra.mxu0 0.0
        %969 = vmatpush.msra.mxu0 0.0
        %970 = vmatpush.msra.mxu0 0.0
        %971 = vmatpush.msra.mxu0 0.0
        %972 = vmatpush.msra.mxu0 0.0
        %973 = vmatpush.msra.mxu0 0.0
        %974 = vmatpush.msra.mxu0 %v953
        %975 = vmatpush.msra.mxu0 %v952
        %976 = vmatmul.f32.gmra.mxu0 %v955
        %v977 = vpop.f32.mrf.mxu0
        %v978 = vadd.f32 0.0, %v977
        %979 = vmatmul.f32.gmra.mxu0 %v958
        %v980 = vpop.f32.mrf.mxu0
        %v981 = vadd.f32 0.0, %v980
        %982 = vdwg.mxu0
        %s983 = scalar_lea.vmem [#allocation2], 32
        %v984 = vld [vmem:[%s983] sm:$0xff]
        %v985 = vld [vmem:[%s983 + $0x8] sm:$0xff]
        %s986 = scalar_lea.vmem [#allocation14], 16
        %v987 = vld [vmem:[%s986] sm:$0xff]
        %v988 = vld [vmem:[%s986 + $0x8] sm:$0xff]
        %989 = vmatpush.msra.mxu0 0.0
        %990 = vmatpush.msra.mxu0 0.0
        %991 = vmatpush.msra.mxu0 0.0
        %992 = vmatpush.msra.mxu0 0.0
        %993 = vmatpush.msra.mxu0 0.0
        %994 = vmatpush.msra.mxu0 0.0
        %995 = vmatpush.msra.mxu0 0.0
        %996 = vmatpush.msra.mxu0 0.0
        %997 = vmatpush.msra.mxu0 0.0
        %998 = vmatpush.msra.mxu0 0.0
        %999 = vmatpush.msra.mxu0 0.0
        %1000 = vmatpush.msra.mxu0 0.0
        %1001 = vmatpush.msra.mxu0 0.0
        %1002 = vmatpush.msra.mxu0 0.0
        %1003 = vmatpush.msra.mxu0 %v988
        %1004 = vmatpush.msra.mxu0 %v987
        %1005 = vmatmul.f32.gmra.mxu0 %v955
        %v1006 = vpop.f32.mrf.mxu0
        %v1007 = vadd.f32 0.0, %v1006
        %1008 = vmatmul.f32.gmra.mxu0 %v958
        %v1009 = vpop.f32.mrf.mxu0
        %v1010 = vadd.f32 0.0, %v1009
        %1011 = vdwg.mxu0
        %1012 = vmatpush.msra.mxu0 0.0
        %1013 = vmatpush.msra.mxu0 0.0
        %1014 = vmatpush.msra.mxu0 0.0
        %1015 = vmatpush.msra.mxu0 0.0
        %1016 = vmatpush.msra.mxu0 0.0
        %1017 = vmatpush.msra.mxu0 0.0
        %1018 = vmatpush.msra.mxu0 0.0
        %1019 = vmatpush.msra.mxu0 0.0
        %1020 = vmatpush.msra.mxu0 0.0
        %1021 = vmatpush.msra.mxu0 0.0
        %1022 = vmatpush.msra.mxu0 0.0
        %1023 = vmatpush.msra.mxu0 0.0
        %1024 = vmatpush.msra.mxu0 0.0
        %1025 = vmatpush.msra.mxu0 0.0
        %1026 = vmatpush.msra.mxu0 %v1010
        %1027 = vmatpush.msra.mxu0 %v1007
        %1028 = vmatmul.f32.gmra.mxu0 %v872
        %v1029 = vpop.f32.mrf.mxu0
        %v1030 = vadd.f32 0.0, %v1029
        %1031 = vmatmul.f32.gmra.mxu0 %v875
        %v1032 = vpop.f32.mrf.mxu0
        %v1033 = vadd.f32 0.0, %v1032
        %1034 = vdwg.mxu0
        %v1036 = vsel %vm781, %v984, 0
        %v1039 = vsel %vm781, %v985, 0
        %1041 = vmatpush.msra.mxu0 0.0
        %1042 = vmatpush.msra.mxu0 0.0
        %1043 = vmatpush.msra.mxu0 0.0
        %1044 = vmatpush.msra.mxu0 0.0
        %1045 = vmatpush.msra.mxu0 0.0
        %1046 = vmatpush.msra.mxu0 0.0
        %1047 = vmatpush.msra.mxu0 0.0
        %1048 = vmatpush.msra.mxu0 0.0
        %1049 = vmatpush.msra.mxu0 0.0
        %1050 = vmatpush.msra.mxu0 0.0
        %1051 = vmatpush.msra.mxu0 0.0
        %1052 = vmatpush.msra.mxu0 0.0
        %1053 = vmatpush.msra.mxu0 0.0
        %1054 = vmatpush.msra.mxu0 0.0
        %1055 = vmatpush.msra.mxu0 %v981
        %1056 = vmatpush.msra.mxu0 %v978
        %1057 = vmatmul.f32.gmra.mxu0 %v1036
        %v1058 = vpop.f32.mrf.mxu0
        %v1059 = vadd.f32 %v1030, %v1058
        %1060 = vmatmul.f32.gmra.mxu0 %v1039
        %v1061 = vpop.f32.mrf.mxu0
        %v1062 = vadd.f32 %v1033, %v1061
        %1063 = vdwg.mxu0
        %s1064 = scalar_lea.vmem [#allocation14], 32
        %v1065 = vld [vmem:[%s1064] sm:$0xff]
        %v1066 = vld [vmem:[%s1064 + $0x8] sm:$0xff]
        %1067 = vmatpush.msra.mxu0 0.0
        %1068 = vmatpush.msra.mxu0 0.0
        %1069 = vmatpush.msra.mxu0 0.0
        %1070 = vmatpush.msra.mxu0 0.0
        %1071 = vmatpush.msra.mxu0 0.0
        %1072 = vmatpush.msra.mxu0 0.0
        %1073 = vmatpush.msra.mxu0 0.0
        %1074 = vmatpush.msra.mxu0 0.0
        %1075 = vmatpush.msra.mxu0 0.0
        %1076 = vmatpush.msra.mxu0 0.0
        %1077 = vmatpush.msra.mxu0 0.0
        %1078 = vmatpush.msra.mxu0 0.0
        %1079 = vmatpush.msra.mxu0 0.0
        %1080 = vmatpush.msra.mxu0 0.0
        %1081 = vmatpush.msra.mxu0 %v1066
        %1082 = vmatpush.msra.mxu0 %v1065
        %1083 = vmatmul.f32.gmra.mxu0 %v955
        %v1084 = vpop.f32.mrf.mxu0
        %v1085 = vadd.f32 0.0, %v1084
        %1086 = vmatmul.f32.gmra.mxu0 %v958
        %v1087 = vpop.f32.mrf.mxu0
        %v1088 = vadd.f32 0.0, %v1087
        %1089 = vdwg.mxu0
        %v1090 = vadd.f32 %v1059, %v1085
        %v1091 = vadd.f32 %v1062, %v1088
        %v1092 = vld [vmem:[#allocation16] sm:$0x1]
        %v1094 = vperm.slane %v1092, 0
        %v1096 = vadd.f32 %v1090, %v1094
        %v1097 = vadd.f32 %v1091, %v1094
        %v1098 = vmax.f32 %v1096, 0.0
        %v1099 = vmax.f32 %v1097, 0.0
        %v1100 = vld [vmem:[#allocation17] sm:$0xff]
        %v1101 = vld [vmem:[#allocation17 + $0x8] sm:$0xff]
        %v1102 = vld [vmem:[#allocation17 + $0x10] sm:$0xff]
        %v1103 = vld [vmem:[#allocation17 + $0x18] sm:$0xff]
        %vm1104 = vcmask 261120
        %v1106 = vsel %vm1104, %v1098, 0
        %v1109 = vsel %vm1104, %v1099, 0
        %1111 = vmatpush.msra.mxu0 0.0
        %1112 = vmatpush.msra.mxu0 0.0
        %1113 = vmatpush.msra.mxu0 0.0
        %1114 = vmatpush.msra.mxu0 0.0
        %1115 = vmatpush.msra.mxu0 0.0
        %1116 = vmatpush.msra.mxu0 0.0
        %1117 = vmatpush.msra.mxu0 0.0
        %1118 = vmatpush.msra.mxu0 0.0
        %1119 = vmatpush.msra.mxu0 0.0
        %1120 = vmatpush.msra.mxu0 0.0
        %1121 = vmatpush.msra.mxu0 0.0
        %1122 = vmatpush.msra.mxu0 0.0
        %1123 = vmatpush.msra.mxu0 %v1103
        %1124 = vmatpush.msra.mxu0 %v1102
        %1125 = vmatpush.msra.mxu0 %v1101
        %1126 = vmatpush.msra.mxu0 %v1100
        %1127 = vmatmul.f32.gmra.mxu0 %v1106
        %v1128 = vpop.f32.mrf.mxu0
        %v1129 = vadd.f32 0.0, %v1128
        %1130 = vmatmul.f32.gmra.mxu0 %v1109
        %v1131 = vpop.f32.mrf.mxu0
        %v1132 = vadd.f32 0.0, %v1131
        %1133 = vdwg.mxu0
        %s1134 = scalar_lea.vmem [#allocation17], 32
        %v1135 = vld [vmem:[%s1134] sm:$0xff]
        %v1136 = vld [vmem:[%s1134 + $0x8] sm:$0xff]
        %v1137 = vld [vmem:[%s1134 + $0x10] sm:$0xff]
        %v1138 = vld [vmem:[%s1134 + $0x18] sm:$0xff]
        %1139 = vmatpush.msra.mxu0 0.0
        %1140 = vmatpush.msra.mxu0 0.0
        %1141 = vmatpush.msra.mxu0 0.0
        %1142 = vmatpush.msra.mxu0 0.0
        %1143 = vmatpush.msra.mxu0 0.0
        %1144 = vmatpush.msra.mxu0 0.0
        %1145 = vmatpush.msra.mxu0 0.0
        %1146 = vmatpush.msra.mxu0 0.0
        %1147 = vmatpush.msra.mxu0 0.0
        %1148 = vmatpush.msra.mxu0 0.0
        %1149 = vmatpush.msra.mxu0 0.0
        %1150 = vmatpush.msra.mxu0 0.0
        %1151 = vmatpush.msra.mxu0 %v1138
        %1152 = vmatpush.msra.mxu0 %v1137
        %1153 = vmatpush.msra.mxu0 %v1136
        %1154 = vmatpush.msra.mxu0 %v1135
        %1155 = vmatmul.f32.gmra.mxu0 %v1106
        %v1156 = vpop.f32.mrf.mxu0
        %v1157 = vadd.f32 0.0, %v1156
        %1158 = vmatmul.f32.gmra.mxu0 %v1109
        %v1159 = vpop.f32.mrf.mxu0
        %v1160 = vadd.f32 0.0, %v1159
        %1161 = vdwg.mxu0
        %1162 = vmatpush.msra.mxu0 0.0
        %1163 = vmatpush.msra.mxu0 0.0
        %1164 = vmatpush.msra.mxu0 0.0
        %1165 = vmatpush.msra.mxu0 0.0
        %1166 = vmatpush.msra.mxu0 0.0
        %1167 = vmatpush.msra.mxu0 0.0
        %1168 = vmatpush.msra.mxu0 0.0
        %1169 = vmatpush.msra.mxu0 0.0
        %1170 = vmatpush.msra.mxu0 0.0
        %1171 = vmatpush.msra.mxu0 0.0
        %1172 = vmatpush.msra.mxu0 0.0
        %1173 = vmatpush.msra.mxu0 0.0
        %1174 = vmatpush.msra.mxu0 0.0
        %1175 = vmatpush.msra.mxu0 0.0
        %1176 = vmatpush.msra.mxu0 %v1160
        %1177 = vmatpush.msra.mxu0 %v1157
        %1178 = vmatmul.f32.gmra.mxu0 %v872
        %v1179 = vpop.f32.mrf.mxu0
        %v1180 = vadd.f32 0.0, %v1179
        %1181 = vmatmul.f32.gmra.mxu0 %v875
        %v1182 = vpop.f32.mrf.mxu0
        %v1183 = vadd.f32 0.0, %v1182
        %1184 = vdwg.mxu0
        %1185 = vmatpush.msra.mxu0 0.0
        %1186 = vmatpush.msra.mxu0 0.0
        %1187 = vmatpush.msra.mxu0 0.0
        %1188 = vmatpush.msra.mxu0 0.0
        %1189 = vmatpush.msra.mxu0 0.0
        %1190 = vmatpush.msra.mxu0 0.0
        %1191 = vmatpush.msra.mxu0 0.0
        %1192 = vmatpush.msra.mxu0 0.0
        %1193 = vmatpush.msra.mxu0 0.0
        %1194 = vmatpush.msra.mxu0 0.0
        %1195 = vmatpush.msra.mxu0 0.0
        %1196 = vmatpush.msra.mxu0 0.0
        %1197 = vmatpush.msra.mxu0 0.0
        %1198 = vmatpush.msra.mxu0 0.0
        %1199 = vmatpush.msra.mxu0 %v1132
        %1200 = vmatpush.msra.mxu0 %v1129
        %1201 = vmatmul.f32.gmra.mxu0 %v1036
        %v1202 = vpop.f32.mrf.mxu0
        %v1203 = vadd.f32 %v1180, %v1202
        %1204 = vmatmul.f32.gmra.mxu0 %v1039
        %v1205 = vpop.f32.mrf.mxu0
        %v1206 = vadd.f32 %v1183, %v1205
        %1207 = vdwg.mxu0
        %s1208 = scalar_lea.vmem [#allocation17], 64
        %v1209 = vld [vmem:[%s1208] sm:$0xff]
        %v1210 = vld [vmem:[%s1208 + $0x8] sm:$0xff]
        %v1211 = vld [vmem:[%s1208 + $0x10] sm:$0xff]
        %v1212 = vld [vmem:[%s1208 + $0x18] sm:$0xff]
        %1213 = vmatpush.msra.mxu0 0.0
        %1214 = vmatpush.msra.mxu0 0.0
        %1215 = vmatpush.msra.mxu0 0.0
        %1216 = vmatpush.msra.mxu0 0.0
        %1217 = vmatpush.msra.mxu0 0.0
        %1218 = vmatpush.msra.mxu0 0.0
        %1219 = vmatpush.msra.mxu0 0.0
        %1220 = vmatpush.msra.mxu0 0.0
        %1221 = vmatpush.msra.mxu0 0.0
        %1222 = vmatpush.msra.mxu0 0.0
        %1223 = vmatpush.msra.mxu0 0.0
        %1224 = vmatpush.msra.mxu0 0.0
        %1225 = vmatpush.msra.mxu0 %v1212
        %1226 = vmatpush.msra.mxu0 %v1211
        %1227 = vmatpush.msra.mxu0 %v1210
        %1228 = vmatpush.msra.mxu0 %v1209
        %1229 = vmatmul.f32.gmra.mxu0 %v1106
        %v1230 = vpop.f32.mrf.mxu0
        %v1231 = vadd.f32 0.0, %v1230
        %1232 = vmatmul.f32.gmra.mxu0 %v1109
        %v1233 = vpop.f32.mrf.mxu0
        %v1234 = vadd.f32 0.0, %v1233
        %1235 = vdwg.mxu0
        %v1236 = vadd.f32 %v1203, %v1231
        %v1237 = vadd.f32 %v1206, %v1234
        %v1238 = vld [vmem:[#allocation19] sm:$0x1]
        %v1240 = vperm.slane %v1238, 0
        %v1242 = vadd.f32 %v1236, %v1240
        %v1243 = vadd.f32 %v1237, %v1240
        %v1244 = vmax.f32 %v1242, 0.0
        %v1245 = vmax.f32 %v1243, 0.0
        %v1246 = vld [vmem:[%s13] sm:$0xff]
        %v1247 = vld [vmem:[%s13 + $0x8] sm:$0xff]
        %v1248 = vld [vmem:[#allocation20] sm:$0x1]
        %v1250 = vperm.slane %v1248, 0
        %1252 = vmatpush.msra.mxu0 0.0
        %1253 = vmatpush.msra.mxu0 0.0
        %1254 = vmatpush.msra.mxu0 0.0
        %1255 = vmatpush.msra.mxu0 0.0
        %1256 = vmatpush.msra.mxu0 0.0
        %1257 = vmatpush.msra.mxu0 0.0
        %1258 = vmatpush.msra.mxu0 0.0
        %1259 = vmatpush.msra.mxu0 0.0
        %1260 = vmatpush.msra.mxu0 0.0
        %1261 = vmatpush.msra.mxu0 0.0
        %1262 = vmatpush.msra.mxu0 0.0
        %1263 = vmatpush.msra.mxu0 0.0
        %1264 = vmatpush.msra.mxu0 0.0
        %1265 = vmatpush.msra.mxu0 0.0
        %1266 = vmatpush.msra.mxu0 %v1247
        %1267 = vmatpush.msra.mxu0 %v1246
        %1268 = vmatmul.f32.gmra.mxu0 %v955
        %v1269 = vpop.f32.mrf.mxu0
        %v1270 = vadd.f32 %v1250, %v1269
        %1271 = vmatmul.f32.gmra.mxu0 %v958
        %v1272 = vpop.f32.mrf.mxu0
        %v1273 = vadd.f32 %v1250, %v1272
        %1274 = vdwg.mxu0
        %v1275 = vadd.f32 %v1244, %v1270
        %v1276 = vadd.f32 %v1245, %v1273
        %v1277 = vmax.f32 %v1275, 0.0
        %v1278 = vmax.f32 %v1276, 0.0
        %v1279 = vld [vmem:[#allocation5] sm:$0x1]
        %v1281 = vsel %vm781, %v1279, 0
        %1283 = vmatpush.msra.mxu0 0.0
        %1284 = vmatpush.msra.mxu0 0.0
        %1285 = vmatpush.msra.mxu0 0.0
        %1286 = vmatpush.msra.mxu0 0.0
        %1287 = vmatpush.msra.mxu0 0.0
        %1288 = vmatpush.msra.mxu0 0.0
        %1289 = vmatpush.msra.mxu0 0.0
        %1290 = vmatpush.msra.mxu0 0.0
        %1291 = vmatpush.msra.mxu0 0.0
        %1292 = vmatpush.msra.mxu0 0.0
        %1293 = vmatpush.msra.mxu0 0.0
        %1294 = vmatpush.msra.mxu0 0.0
        %1295 = vmatpush.msra.mxu0 0.0
        %1296 = vmatpush.msra.mxu0 0.0
        %1297 = vmatpush.msra.mxu0 %v1278
        %1298 = vmatpush.msra.mxu0 %v1277
        %1299 = vmatmul.f32.gmra.mxu0 %v1281
        %v1300 = vpop.f32.mrf.mxu0
        %v1301 = vadd.f32 0.0, %v1300
        %1302 = vdwg.mxu0
        %v1303 = vld [vmem:[%s15] sm:$0xff]
        %v1304 = vld [vmem:[%s15 + $0x8] sm:$0xff]
        %v1305 = vld [vmem:[%s15 + $0x10] sm:$0xff]
        %v1306 = vld [vmem:[%s15 + $0x18] sm:$0xff]
        %v1307 = vld [vmem:[%s16] sm:$0x1]
        %v1309 = vsel %vm1104, %v1301, 0
        %1311 = vmatpush.msra.mxu0 0.0
        %1312 = vmatpush.msra.mxu0 0.0
        %1313 = vmatpush.msra.mxu0 0.0
        %1314 = vmatpush.msra.mxu0 0.0
        %1315 = vmatpush.msra.mxu0 0.0
        %1316 = vmatpush.msra.mxu0 0.0
        %1317 = vmatpush.msra.mxu0 0.0
        %1318 = vmatpush.msra.mxu0 0.0
        %1319 = vmatpush.msra.mxu0 0.0
        %1320 = vmatpush.msra.mxu0 0.0
        %1321 = vmatpush.msra.mxu0 0.0
        %1322 = vmatpush.msra.mxu0 0.0
        %1323 = vmatpush.msra.mxu0 %v1306
        %1324 = vmatpush.msra.mxu0 %v1305
        %1325 = vmatpush.msra.mxu0 %v1304
        %1326 = vmatpush.msra.mxu0 %v1303
        %1327 = vmatmul.f32.gmra.mxu0 %v1309
        %v1328 = vpop.f32.mrf.mxu0
        %v1329 = vadd.f32 %v1307, %v1328
        %1330 = vdwg.mxu0
        %vm1331 = vcmask 516096
        %1332 = vst.msk [vmem:[%s723] sm:$0x1] %vm1331, %v1329
        %s1333 = sand.u32 %s408, 1
        %s1334 = scalar_lea.sflag [#allocation4], %s1333
        %s1335 = sand.u32 %s408, 1
        %s1336 = scalar_lea.vmem [#allocation22], %s1335
        // Predicated region
        $region137: #{tpu_custom_call.1} parent=87 // pred_check
          %p1337 = pneg %p418
        $region138: #{tpu_custom_call.1} parent=87 // pred_check_branch
          %1339 = sbr.rel (%p1337) target = $region140
        $region139: #{tpu_custom_call.1} parent=87 // pred_region
          %1341 = vsyncadd %s1334, 0
          %s1342 = scalar_lea.hbm %s17, %s38
          %s1344 = sshll.u32 %s1336, 4
          %s1345 = int_to_ptr.vmem [resolvable:$true] %s1344
          %s1346 = sshll.u32 %s1342, 4
          %s1347 = int_to_ptr.hbm [resolvable:$true] %s1346
          %1349 = dma.vmem_to_hbm [thread:$0]  %s1345, 16, %s1347, %s1334
        $region140: #{tpu_custom_call.1} parent=87 // pred_fallthru
          _
      $region88: #{tpu_custom_call.1} parent=5 // pred_fallthru
        _
      %p1350 = scmp.le.s32.totalorder 2, %s33
      // Predicated region
      $region141: #{tpu_custom_call.1} parent=5 // pred_check
        %p1351 = pneg %p1350
      $region142: #{tpu_custom_call.1} parent=5 // pred_check_branch
        %1353 = sbr.rel (%p1351) target = $region144
      $region143: #{tpu_custom_call.1} parent=5 // pred_region
        %s1354 = ssub.s32 %s33, 2
        // Predicated region
        $region145: #{tpu_custom_call.1} parent=143 // pred_check
          %p1355 = pneg %p424
        $region146: #{tpu_custom_call.1} parent=143 // pred_check_branch
          %1357 = sbr.rel (%p1355) target = $region148
        $region147: #{tpu_custom_call.1} parent=143 // pred_region
          %s1358 = sand.u32 %s409, 1
          %s1359 = scalar_lea.sflag [#allocation4], %s1358
          %s1360 = sand.u32 %s409, 1
          %s1361 = scalar_lea.vmem [#allocation22], %s1360
          %1363 = dma.done %s1359, 16
        $region148: #{tpu_custom_call.1} parent=143 // pred_fallthru
          _
      $region144: #{tpu_custom_call.1} parent=5 // pred_fallthru
        _
    $region6: #{tpu_custom_call.1} parent=1 // loop_footer
      %s37 = sadd.s32 1, %s33
    $region7: #{tpu_custom_call.1} parent=1 // loop_footer_branch
      %32 = sbr.rel target = $region3
    $region8: #{tpu_custom_call.1} parent=1 // loop_exit
      _
    %1364 = vsyncpa [#allocation3], 1
    %s1365 = scalar_lea.sflag [#allocation3], 1
    %1366 = vsyncpa %s1365, 1
    %1367 = vsyncpa [#allocation6], 1
    %1368 = vsyncpa [#allocation9], 1
    %1369 = vsyncpa [#allocation12], 1
    %1370 = vsyncpa [#allocation15], 1
    %1371 = vsyncpa [#allocation18], 1
    %1372 = vsyncpa [#allocation21], 1
    %1373 = vsyncpa [#allocation4], 1
    %s1374 = scalar_lea.sflag [#allocation4], 1
    %1375 = vsyncpa %s1374, 1

</llo_original>
